<compile_context>
chip_gen: v6e
topology: v6e:2x2x1
jax: 0.10.0
libtpu: 0.0.40
codegen_flags: <defaults>
</compile_context>

<pallas_src>
import functools

import jax
import jax.numpy as jnp
from jax.experimental import pallas as pl
from jax.experimental.pallas import tpu as pltpu

_LANE = 128
_SUBLANE = 8


def _round_up(x, m):
    return (x + m - 1) // m * m


def _cdiv(a, b):
    return (a + b - 1) // b


def _gelu(x, approximate):
    if approximate:
        return jax.nn.gelu(x, approximate=True)          # tanh/exp -> EUP slot
    # PyTorch nn.GELU() default: exact erf GELU.
    return 0.5 * x * (1.0 + jax.lax.erf(x * (1.0 / jnp.sqrt(2.0).astype(x.dtype))))


def _mlp_resident_kernel(x_ref, w1_ref, b1_ref, w2_ref, b2_ref, o_ref, *,
                         approximate_gelu):
    """Both weight matrices resident in VMEM; one row tile per grid step."""
    h = jnp.dot(x_ref[...], w1_ref[...], preferred_element_type=jnp.float32)
    h = _gelu(h + b1_ref[...], approximate_gelu)         # bias/GELU in f32
    # Dropout (eval mode) -> identity.
    h = h.astype(w2_ref.dtype)
    o = jnp.dot(h, w2_ref[...], preferred_element_type=jnp.float32)
    o_ref[...] = (o + b2_ref[...]).astype(o_ref.dtype)


def _mlp_hid_tiled_kernel(x_ref, w1_ref, b1_ref, w2_ref, b2_ref, o_ref,
                          acc_ref, *, approximate_gelu):
    """Hidden dim tiled on grid axis 1; f32 accumulator resident across it."""
    j = pl.program_id(1)

    @pl.when(j == 0)
    def _():
        acc_ref[...] = jnp.zeros_like(acc_ref)

    h = jnp.dot(x_ref[...], w1_ref[...], preferred_element_type=jnp.float32)
    h = _gelu(h + b1_ref[...], approximate_gelu)
    # Dropout (eval mode) -> identity.
    h = h.astype(w2_ref.dtype)
    acc_ref[...] += jnp.dot(h, w2_ref[...], preferred_element_type=jnp.float32)

    @pl.when(j == pl.num_programs(1) - 1)
    def _():
        o_ref[...] = (acc_ref[...] + b2_ref[...]).astype(o_ref.dtype)


def _to_2d(a):
    a = jnp.asarray(a)
    return a.reshape(1, -1) if a.ndim == 1 else a


def _pad_to(a, rows, cols, dtype):
    a = _to_2d(a).astype(dtype)
    pr, pc = rows - a.shape[0], cols - a.shape[1]
    if pr or pc:                                          # fast path: no-op pad skipped
        a = jnp.pad(a, ((0, pr), (0, pc)))
    return a


def graph_encoder_mlp(x, w1, b1, w2, b2, *, tm=None, compute_dtype=None,
                      approximate_gelu=False, force_hid_tiling=False):
    """GraphEncoderMLP forward (eval mode).

    x: (N, in_dim).  w1: (in_dim, hid), b1: (hid,)/(1, hid),
    w2: (hid, out), b2: (out,)/(1, out).  Returns (N, out_dim) in x.dtype.
    """
    n, in_dim = x.shape
    hid_dim = w1.shape[-1]
    out_dim = w2.shape[-1]
    out_dtype = x.dtype
    cd = jnp.dtype(compute_dtype) if compute_dtype is not None else jnp.dtype(x.dtype)
    cd_b = cd.itemsize
    out_b = jnp.dtype(out_dtype).itemsize

    # ---- Per-generation VMEM budget (64 MiB/TC on v7x, 128 MiB on v5e/v6e).
    try:
        vmem_cap = int(pltpu.get_tpu_info().vmem_capacity_bytes)
    except Exception:
        vmem_cap = 64 * 1024 * 1024                       # conservative default
    vmem_budget = int(vmem_cap * 0.80)                    # headroom for Mosaic scratch

    # ---- Lane-pad feature dims (unmasked stores, full MXU K/N lanes).
    in_p = _round_up(in_dim, _LANE)
    hid_p = _round_up(hid_dim, _LANE)
    out_p = _round_up(out_dim, _LANE)

    # ---- Row tile: big tiles amortize the ~0.35us/step overhead; minimize
    # row padding and keep >= 2 tiles so both v7x TensorCores get work.
    if tm is None:
        tm = 1024 if vmem_cap >= (96 << 20) else 512
    n_su = _round_up(n, _SUBLANE)
    n_tiles = _cdiv(n_su, tm)
    if n_su > _SUBLANE:
        n_tiles = max(n_tiles, 2)
    tm_eff = _round_up(_cdiv(n_su, n_tiles), _SUBLANE)

    # ---- VMEM accounting (matches actual buffer counts: weights/biases are
    # single-buffered via pl.Buffered(1); x/out tiles double-buffered).
    weight_bytes = (in_p * hid_p * cd_b + hid_p * out_p * cd_b
                    + (hid_p + out_p) * 4)

    def act_bytes(tm_r):
        return (2 * tm_r * in_p * cd_b                    # x tiles (double-buffered)
                + 2 * tm_r * out_p * out_b                # out tiles (double-buffered)
                + tm_r * hid_p * 4)                       # f32 hidden intermediate

    use_resident = not force_hid_tiling
    if use_resident and weight_bytes + act_bytes(tm_eff) > vmem_budget:
        if weight_bytes <= vmem_budget // 2:
            # Shrink the row tile until the resident-weight path fits.
            while (weight_bytes + act_bytes(tm_eff) > vmem_budget
                   and tm_eff > _SUBLANE):
                tm_eff = max(_SUBLANE, _round_up(tm_eff // 2, _SUBLANE))
        if weight_bytes + act_bytes(tm_eff) > vmem_budget:
            use_resident = False

    th = hid_p
    if use_resident:
        vmem_need = weight_bytes + act_bytes(tm_eff)
    else:
        # Fallback: tile the hidden dim; accumulate the second matmul in f32.
        def hid_tiled_bytes(tm_r, th_r):
            return (2 * tm_r * in_p * cd_b                # x tiles
                    + 2 * tm_r * out_p * out_b            # out tiles
                    + 2 * in_p * th_r * cd_b              # W1 column blocks
                    + 2 * th_r * out_p * cd_b             # W2 row blocks
                    + 2 * th_r * 4 + out_p * 4            # biases
                    + tm_r * out_p * 4                    # f32 accumulator scratch
                    + tm_r * th_r * 4)                    # f32 hidden chunk
        while th > _LANE and hid_tiled_bytes(tm_eff, th) > vmem_budget:
            th = max(_LANE, _round_up(th // 2, _LANE))
        while tm_eff > _SUBLANE and hid_tiled_bytes(tm_eff, th) > vmem_budget:
            tm_eff = max(_SUBLANE, _round_up(tm_eff // 2, _SUBLANE))
        # Pad hid so th divides it; gelu(0)=0 and zero W2 rows keep this exact.
        hid_p = _cdiv(hid_p, th) * th
        vmem_need = hid_tiled_bytes(tm_eff, th)

    n_p = tm_eff * _cdiv(n_su, tm_eff)
    grid_rows = n_p // tm_eff

    # ---- Pad operands only when needed (fast path avoids HBM round-trips).
    xp = _pad_to(x, n_p, in_p, cd)
    w1p = _pad_to(w1, in_p, hid_p, cd)
    w2p = _pad_to(w2, hid_p, out_p, cd)
    b1p = _pad_to(b1, 1, hid_p, jnp.float32)
    b2p = _pad_to(b2, 1, out_p, jnp.float32)

    vmem_limit = int(min(max(int(vmem_need * 1.25), 32 * 1024 * 1024), vmem_budget))
    cost = pl.CostEstimate(
        flops=2 * n_p * in_p * hid_p + 2 * n_p * hid_p * out_p,
        transcendentals=n_p * hid_p,
        bytes_accessed=(n_p * in_p * cd_b + n_p * out_p * out_b
                        + in_p * hid_p * cd_b + hid_p * out_p * cd_b
                        + (hid_p + out_p) * 4),
    )

    def call(single_buffer_weights):
        const_mode = pl.Buffered(1) if single_buffer_weights else None
        if use_resident:
            kernel = functools.partial(_mlp_resident_kernel,
                                       approximate_gelu=approximate_gelu)
            grid = (grid_rows,)
            in_specs = [
                pl.BlockSpec((tm_eff, in_p), lambda i: (i, 0)),
                pl.BlockSpec((in_p, hid_p), lambda i: (0, 0),
                             pipeline_mode=const_mode),
                pl.BlockSpec((1, hid_p), lambda i: (0, 0),
                             pipeline_mode=const_mode),
                pl.BlockSpec((hid_p, out_p), lambda i: (0, 0),
                             pipeline_mode=const_mode),
                pl.BlockSpec((1, out_p), lambda i: (0, 0),
                             pipeline_mode=const_mode),
            ]
            out_specs = pl.BlockSpec((tm_eff, out_p), lambda i: (i, 0))
            scratch_shapes = []
            dim_sem = ("parallel",)
        else:
            kernel = functools.partial(_mlp_hid_tiled_kernel,
                                       approximate_gelu=approximate_gelu)
            grid = (grid_rows, hid_p // th)
            in_specs = [
                pl.BlockSpec((tm_eff, in_p), lambda i, j: (i, 0)),
                pl.BlockSpec((in_p, th), lambda i, j: (0, j)),
                pl.BlockSpec((1, th), lambda i, j: (0, j)),
                pl.BlockSpec((th, out_p), lambda i, j: (j, 0)),
                pl.BlockSpec((1, out_p), lambda i, j: (0, 0),
                             pipeline_mode=const_mode),
            ]
            out_specs = pl.BlockSpec((tm_eff, out_p), lambda i, j: (i, 0))
            scratch_shapes = [pltpu.VMEM((tm_eff, out_p), jnp.float32)]
            dim_sem = ("parallel", "arbitrary")

        return pl.pallas_call(
            kernel,
            out_shape=jax.ShapeDtypeStruct((n_p, out_p), out_dtype),
            grid_spec=pltpu.PrefetchScalarGridSpec(
                num_scalar_prefetch=0,
                grid=grid,
                in_specs=in_specs,
                out_specs=out_specs,
                scratch_shapes=scratch_shapes,
            ),
            compiler_params=pltpu.CompilerParams(
                dimension_semantics=dim_sem,
                vmem_limit_bytes=vmem_limit,
            ),
            cost_estimate=cost,
        )(xp, w1p, b1p, w2p, b2p)

    try:
        out_padded = call(single_buffer_weights=True)
    except Exception:
        # Defensive retry if pl.Buffered(1) is rejected by this JAX build:
        # fall back to default double-buffering of the weight blocks.
        out_padded = call(single_buffer_weights=False)

    if n_p != n or out_p != out_dim:
        out_padded = out_padded[:n, :out_dim]
    return out_padded


def init_params(key, in_dim, hid_dim, out_dim, dtype=jnp.float32):
    # Mimics nn.Linear's uniform(-1/sqrt(fan_in), +1/sqrt(fan_in)) init.
    k1, k2, k3, k4 = jax.random.split(key, 4)
    lim1 = 1.0 / jnp.sqrt(in_dim)
    lim2 = 1.0 / jnp.sqrt(hid_dim)
    w1 = jax.random.uniform(k1, (in_dim, hid_dim), dtype, -lim1, lim1)
    b1 = jax.random.uniform(k2, (1, hid_dim), dtype, -lim1, lim1)
    w2 = jax.random.uniform(k3, (hid_dim, out_dim), dtype, -lim2, lim2)
    b2 = jax.random.uniform(k4, (1, out_dim), dtype, -lim2, lim2)
    return w1, b1, w2, b2


def reference_mlp(x, w1, b1, w2, b2):
    h = x @ w1 + b1
    h = 0.5 * h * (1.0 + jax.lax.erf(h / jnp.sqrt(2.0)))
    return h @ w2 + b2


if __name__ == "__main__":
    # Small shapes consistent with the module's forward: data is (N, in_dim).
    N, in_dim, hid_dim, out_dim = 128, 32, 64, 32

    key = jax.random.PRNGKey(0)
    kx, kp = jax.random.split(key)
    x = jax.random.normal(kx, (N, in_dim), jnp.float32)
    w1, b1, w2, b2 = init_params(kp, in_dim, hid_dim, out_dim)

    ref = reference_mlp(x, w1, b1, w2, b2)

    # Default path: resident weights, exact erf GELU, f32 (PyTorch numerics).
    out = jax.block_until_ready(graph_encoder_mlp(x, w1, b1, w2, b2))
    assert out.shape == (N, out_dim)
    assert jnp.allclose(out, ref, atol=1e-4, rtol=1e-4), "mismatch vs reference"

    # Hid-tiled fallback path (exercised explicitly at these small shapes).
    out_kt = jax.block_until_ready(
        graph_encoder_mlp(x, w1, b1, w2, b2, force_hid_tiling=True))
    assert jnp.allclose(out_kt, ref, atol=1e-4, rtol=1e-4), "hid-tiled mismatch"

    # Opt-in bf16 MXU compute path (v5e/v6e/v7x): looser tolerance smoke run.
    out_bf16 = jax.block_until_ready(
        graph_encoder_mlp(x, w1, b1, w2, b2, compute_dtype=jnp.bfloat16))
    assert jnp.allclose(out_bf16, ref, atol=5e-2, rtol=5e-2), "bf16 path mismatch"

    # Opt-in tanh GELU (EUP slot) smoke run.
    out_tanh = jax.block_until_ready(
        graph_encoder_mlp(x, w1, b1, w2, b2, approximate_gelu=True))
    assert jnp.allclose(out_tanh, ref, atol=2e-2, rtol=2e-2), "tanh GELU mismatch"

    print("KERNEL_OK")
</pallas_src>

<mosaic_0001>
module attributes {stable_mosaic.version = 11 : i64} {
  func.func @_mlp_resident_kernel(%arg0: i32, %arg1: memref<64x128xf32, #tpu.memory_space<vmem>>, %arg2: memref<128x128xf32, #tpu.memory_space<vmem>>, %arg3: memref<1x128xf32, #tpu.memory_space<vmem>>, %arg4: memref<128x128xf32, #tpu.memory_space<vmem>>, %arg5: memref<1x128xf32, #tpu.memory_space<vmem>>, %arg6: memref<64x128xf32, #tpu.memory_space<vmem>>) attributes {dimension_semantics = [#tpu.dimension_semantics<parallel>], iteration_bounds = array<i64: 2>, scalar_prefetch = 0 : i64, scratch_operands = 0 : i64, tpu.core_type = #tpu.core_type<tc>, window_params = [{transform_indices = @transform_0, window_bounds = array<i64: 64, 128>}, {pipeline_mode = #tpu.pipeline_mode<synchronous>, transform_indices = @transform_1, window_bounds = array<i64: 128, 128>}, {pipeline_mode = #tpu.pipeline_mode<synchronous>, transform_indices = @transform_2, window_bounds = array<i64: 1, 128>}, {pipeline_mode = #tpu.pipeline_mode<synchronous>, transform_indices = @transform_3, window_bounds = array<i64: 128, 128>}, {pipeline_mode = #tpu.pipeline_mode<synchronous>, transform_indices = @transform_4, window_bounds = array<i64: 1, 128>}, {transform_indices = @transform_5, window_bounds = array<i64: 64, 128>}]} {
    %c0 = arith.constant 0 : index
    %c0_0 = arith.constant 0 : index
    %0 = vector.load %arg1[%c0, %c0_0] : memref<64x128xf32, #tpu.memory_space<vmem>>, vector<64x128xf32>
    %c0_1 = arith.constant 0 : index
    %c0_2 = arith.constant 0 : index
    %1 = vector.load %arg2[%c0_1, %c0_2] : memref<128x128xf32, #tpu.memory_space<vmem>>, vector<128x128xf32>
    %cst = arith.constant dense<0.000000e+00> : vector<64x128xf32>
    %2 = tpu.matmul %0, %1, %cst {dimension_numbers = #tpu.dot_dimension_numbers<[1], [0], [0], [1], [0, 0, 1, 1], [], []>} : vector<64x128xf32>, vector<128x128xf32>, vector<64x128xf32> -> vector<64x128xf32>
    %c0_3 = arith.constant 0 : index
    %c0_4 = arith.constant 0 : index
    %3 = vector.load %arg3[%c0_3, %c0_4] : memref<1x128xf32, #tpu.memory_space<vmem>>, vector<1x128xf32>
    %4 = vector.broadcast %3 : vector<1x128xf32> to vector<64x128xf32>
    %5 = arith.addf %2, %4 : vector<64x128xf32>
    %cst_5 = arith.constant 5.000000e-01 : f32
    %6 = vector.broadcast %cst_5 : f32 to vector<64x128xf32>
    %7 = arith.mulf %6, %5 : vector<64x128xf32>
    %cst_6 = arith.constant 2.000000e+00 : f32
    %8 = math.sqrt %cst_6 : f32
    %cst_7 = arith.constant 1.000000e+00 : f32
    %9 = arith.divf %cst_7, %8 : f32
    %10 = vector.broadcast %9 : f32 to vector<64x128xf32>
    %11 = arith.mulf %5, %10 : vector<64x128xf32>
    %12 = math.erf %11 : vector<64x128xf32>
    %cst_8 = arith.constant 1.000000e+00 : f32
    %13 = vector.broadcast %cst_8 : f32 to vector<64x128xf32>
    %14 = arith.addf %13, %12 : vector<64x128xf32>
    %15 = arith.mulf %7, %14 : vector<64x128xf32>
    %c0_9 = arith.constant 0 : index
    %c0_10 = arith.constant 0 : index
    %16 = vector.load %arg4[%c0_9, %c0_10] : memref<128x128xf32, #tpu.memory_space<vmem>>, vector<128x128xf32>
    %cst_11 = arith.constant dense<0.000000e+00> : vector<64x128xf32>
    %17 = tpu.matmul %15, %16, %cst_11 {dimension_numbers = #tpu.dot_dimension_numbers<[1], [0], [0], [1], [0, 0, 1, 1], [], []>} : vector<64x128xf32>, vector<128x128xf32>, vector<64x128xf32> -> vector<64x128xf32>
    %c0_12 = arith.constant 0 : index
    %c0_13 = arith.constant 0 : index
    %18 = vector.load %arg5[%c0_12, %c0_13] : memref<1x128xf32, #tpu.memory_space<vmem>>, vector<1x128xf32>
    %19 = vector.broadcast %18 : vector<1x128xf32> to vector<64x128xf32>
    %20 = arith.addf %17, %19 : vector<64x128xf32>
    %c0_14 = arith.constant 0 : index
    %c0_15 = arith.constant 0 : index
    %21 = vector.load %arg6[%c0_14, %c0_15] : memref<64x128xf32, #tpu.memory_space<vmem>>, vector<64x128xf32>
    tpu.vector_store %arg6[%c0_14, %c0_15], %20 {strides = array<i32>} : memref<64x128xf32, #tpu.memory_space<vmem>>, vector<64x128xf32>,
    return
  }
  func.func @transform_0(%arg0: i32) -> (i32, i32) {
    %c0_i32 = arith.constant 0 : i32
    %c0_i32_0 = arith.constant 0 : i32
    return %arg0, %c0_i32 : i32, i32
  }
  func.func @transform_1(%arg0: i32) -> (i32, i32) {
    %c0_i32 = arith.constant 0 : i32
    %c0_i32_0 = arith.constant 0 : i32
    %c0_i32_1 = arith.constant 0 : i32
    return %c0_i32, %c0_i32_0 : i32, i32
  }
  func.func @transform_2(%arg0: i32) -> (i32, i32) {
    %c0_i32 = arith.constant 0 : i32
    %c0_i32_0 = arith.constant 0 : i32
    %c0_i32_1 = arith.constant 0 : i32
    return %c0_i32, %c0_i32_0 : i32, i32
  }
  func.func @transform_3(%arg0: i32) -> (i32, i32) {
    %c0_i32 = arith.constant 0 : i32
    %c0_i32_0 = arith.constant 0 : i32
    %c0_i32_1 = arith.constant 0 : i32
    return %c0_i32, %c0_i32_0 : i32, i32
  }
  func.func @transform_4(%arg0: i32) -> (i32, i32) {
    %c0_i32 = arith.constant 0 : i32
    %c0_i32_0 = arith.constant 0 : i32
    %c0_i32_1 = arith.constant 0 : i32
    return %c0_i32, %c0_i32_0 : i32, i32
  }
  func.func @transform_5(%arg0: i32) -> (i32, i32) {
    %c0_i32 = arith.constant 0 : i32
    %c0_i32_0 = arith.constant 0 : i32
    return %arg0, %c0_i32 : i32, i32
  }
}

module attributes {stable_mosaic.version = 11 : i64} {
  func.func @_mlp_resident_kernel(%arg0: i32, %arg1: memref<64x128xf32, #tpu.memory_space<vmem>>, %arg2: memref<128x128xf32, #tpu.memory_space<vmem>>, %arg3: memref<1x128xf32, #tpu.memory_space<vmem>>, %arg4: memref<128x128xf32, #tpu.memory_space<vmem>>, %arg5: memref<1x128xf32, #tpu.memory_space<vmem>>, %arg6: memref<64x128xf32, #tpu.memory_space<vmem>>) attributes {dimension_semantics = [#tpu.dimension_semantics<parallel>], iteration_bounds = array<i64: 2>, scalar_prefetch = 0 : i64, scratch_operands = 0 : i64, tpu.core_type = #tpu.core_type<tc>, window_params = [{transform_indices = @transform_0, window_bounds = array<i64: 64, 128>}, {pipeline_mode = #tpu.pipeline_mode<synchronous>, transform_indices = @transform_1, window_bounds = array<i64: 128, 128>}, {pipeline_mode = #tpu.pipeline_mode<synchronous>, transform_indices = @transform_2, window_bounds = array<i64: 1, 128>}, {pipeline_mode = #tpu.pipeline_mode<synchronous>, transform_indices = @transform_3, window_bounds = array<i64: 128, 128>}, {pipeline_mode = #tpu.pipeline_mode<synchronous>, transform_indices = @transform_4, window_bounds = array<i64: 1, 128>}, {transform_indices = @transform_5, window_bounds = array<i64: 64, 128>}]} {
    %c0 = arith.constant 0 : index
    %c0_0 = arith.constant 0 : index
    %0 = vector.load %arg1[%c0, %c0_0] : memref<64x128xf32, #tpu.memory_space<vmem>>, vector<64x128xf32>
    %c0_1 = arith.constant 0 : index
    %c0_2 = arith.constant 0 : index
    %1 = vector.load %arg2[%c0_1, %c0_2] : memref<128x128xf32, #tpu.memory_space<vmem>>, vector<128x128xf32>
    %cst = arith.constant dense<0.000000e+00> : vector<64x128xf32>
    %2 = tpu.matmul %0, %1, %cst {dimension_numbers = #tpu.dot_dimension_numbers<[1], [0], [0], [1], [0, 0, 1, 1], [], []>} : vector<64x128xf32>, vector<128x128xf32>, vector<64x128xf32> -> vector<64x128xf32>
    %c0_3 = arith.constant 0 : index
    %c0_4 = arith.constant 0 : index
    %3 = vector.load %arg3[%c0_3, %c0_4] : memref<1x128xf32, #tpu.memory_space<vmem>>, vector<1x128xf32>
    %4 = vector.broadcast %3 : vector<1x128xf32> to vector<64x128xf32>
    %5 = arith.addf %2, %4 : vector<64x128xf32>
    %cst_5 = arith.constant 5.000000e-01 : f32
    %6 = vector.broadcast %cst_5 : f32 to vector<64x128xf32>
    %7 = arith.mulf %6, %5 : vector<64x128xf32>
    %cst_6 = arith.constant 2.000000e+00 : f32
    %8 = math.sqrt %cst_6 : f32
    %cst_7 = arith.constant 1.000000e+00 : f32
    %9 = arith.divf %cst_7, %8 : f32
    %10 = vector.broadcast %9 : f32 to vector<64x128xf32>
    %11 = arith.mulf %5, %10 : vector<64x128xf32>
    %12 = math.erf %11 : vector<64x128xf32>
    %cst_8 = arith.constant 1.000000e+00 : f32
    %13 = vector.broadcast %cst_8 : f32 to vector<64x128xf32>
    %14 = arith.addf %13, %12 : vector<64x128xf32>
    %15 = arith.mulf %7, %14 : vector<64x128xf32>
    %c0_9 = arith.constant 0 : index
    %c0_10 = arith.constant 0 : index
    %16 = vector.load %arg4[%c0_9, %c0_10] : memref<128x128xf32, #tpu.memory_space<vmem>>, vector<128x128xf32>
    %cst_11 = arith.constant dense<0.000000e+00> : vector<64x128xf32>
    %17 = tpu.matmul %15, %16, %cst_11 {dimension_numbers = #tpu.dot_dimension_numbers<[1], [0], [0], [1], [0, 0, 1, 1], [], []>} : vector<64x128xf32>, vector<128x128xf32>, vector<64x128xf32> -> vector<64x128xf32>
    %c0_12 = arith.constant 0 : index
    %c0_13 = arith.constant 0 : index
    %18 = vector.load %arg5[%c0_12, %c0_13] : memref<1x128xf32, #tpu.memory_space<vmem>>, vector<1x128xf32>
    %19 = vector.broadcast %18 : vector<1x128xf32> to vector<64x128xf32>
    %20 = arith.addf %17, %19 : vector<64x128xf32>
    %c0_14 = arith.constant 0 : index
    %c0_15 = arith.constant 0 : index
    %21 = vector.load %arg6[%c0_14, %c0_15] : memref<64x128xf32, #tpu.memory_space<vmem>>, vector<64x128xf32>
    tpu.vector_store %arg6[%c0_14, %c0_15], %20 {strides = array<i32>} : memref<64x128xf32, #tpu.memory_space<vmem>>, vector<64x128xf32>,
    return
  }
  func.func @transform_0(%arg0: i32) -> (i32, i32) {
    %c0_i32 = arith.constant 0 : i32
    %c0_i32_0 = arith.constant 0 : i32
    return %arg0, %c0_i32 : i32, i32
  }
  func.func @transform_1(%arg0: i32) -> (i32, i32) {
    %c0_i32 = arith.constant 0 : i32
    %c0_i32_0 = arith.constant 0 : i32
    %c0_i32_1 = arith.constant 0 : i32
    return %c0_i32, %c0_i32_0 : i32, i32
  }
  func.func @transform_2(%arg0: i32) -> (i32, i32) {
    %c0_i32 = arith.constant 0 : i32
    %c0_i32_0 = arith.constant 0 : i32
    %c0_i32_1 = arith.constant 0 : i32
    return %c0_i32, %c0_i32_0 : i32, i32
  }
  func.func @transform_3(%arg0: i32) -> (i32, i32) {
    %c0_i32 = arith.constant 0 : i32
    %c0_i32_0 = arith.constant 0 : i32
    %c0_i32_1 = arith.constant 0 : i32
    return %c0_i32, %c0_i32_0 : i32, i32
  }
  func.func @transform_4(%arg0: i32) -> (i32, i32) {
    %c0_i32 = arith.constant 0 : i32
    %c0_i32_0 = arith.constant 0 : i32
    %c0_i32_1 = arith.constant 0 : i32
    return %c0_i32, %c0_i32_0 : i32, i32
  }
  func.func @transform_5(%arg0: i32) -> (i32, i32) {
    %c0_i32 = arith.constant 0 : i32
    %c0_i32_0 = arith.constant 0 : i32
    return %arg0, %c0_i32 : i32, i32
  }
}

</mosaic_0001>

<llo_original>
// kernel: tpu_custom_call.1
$region0: #{tpu_custom_call.1}
  #allocation0 [shape = 'u32[]', space=smem, size = 0x4, offset = 0x4, fixed_abs, tag = 'smem constant byte address 0x4 - core index']
  #allocation1 [shape = 'u32[144,128]{1,0:T(1,128)}', space=vmem, size = 0x12000, scoped, tag = 'internal scratch']
  %s0 = inlined_call_operand.hbm [shape: f32[128,128], index: 0, kind: input, shape index: {}]
  %s1 = inlined_call_operand.hbm [shape: f32[128,128], index: 1, kind: input, shape index: {}]
  %s2 = inlined_call_operand.vmem [shape: f32[1,128], index: 2, kind: input, shape index: {}]
  %s3 = inlined_call_operand.hbm [shape: f32[128,128], index: 3, kind: input, shape index: {}]
  %s4 = inlined_call_operand.vmem [shape: f32[1,128], index: 4, kind: input, shape index: {}]
  %s5 = inlined_call_operand.hbm [shape: f32[128,128], index: 5, kind: output, shape index: {}]
  %s6 = sld [smem:[#allocation0]]
  $region65: #{tpu_custom_call.1} parent=0
    _
  %s8 = ssub.s32 1, %s6
  %s9 = scalar_select 0, %s8, %s6
  $region1: #{tpu_custom_call.1} parent=0
    #allocation2 [shape = 'u8[65536]{0}', space=vmem, size = 0x10000, scoped, tag = 'input window, operand 0']
    #allocation3 [shape = 's32[2]{0}', space=sflag, size = 0x8, scoped, tag = 'scoped memory for tpu_custom_call.1']
    #allocation4 [shape = 's32[2]{0}', space=sflag, size = 0x8, scoped, tag = 'scoped memory for tpu_custom_call.1']
    #allocation5 [shape = 'u8[65536]{0}', space=vmem, size = 0x10000, scoped, tag = 'input window, operand 1, single buffered']
    #allocation6 [shape = 's32[1]{0}', space=sflag, size = 0x4, scoped, tag = 'scoped memory for tpu_custom_call.1']
    #allocation7 [shape = 'u8[65536]{0}', space=vmem, size = 0x10000, scoped, tag = 'input window, operand 3, single buffered']
    #allocation8 [shape = 'u8[65536]{0}', space=vmem, size = 0x10000, scoped, tag = 'output window, operand 0']
    %10 = vsyncpa [#allocation3], 0
    %s11 = scalar_lea.sflag [#allocation3], 1
    %12 = vsyncpa %s11, 0
    %13 = vsyncpa [#allocation6], 0
    %14 = vsyncpa [#allocation4], 0
    %s15 = scalar_lea.sflag [#allocation4], 1
    %16 = vsyncpa %s15, 0
    loop: start=0, step=1, limit=4
    $region2: #{tpu_custom_call.1} parent=1 // loop_pre_header
      _
    $region3: #{tpu_custom_call.1} parent=1 // loop_header
      %s18 = sphi 0, %s22
      %p19 = scmp.ge.s32.totalorder %s18, 4
      %s28 = sphi 0, %s30
      %s31 = sphi 0, %s28
      %s32 = sphi 0, %s31
      %s48 = sphi 0, %s32
      %s52 = sphi 0, %s52
      %s54 = sphi 0, %s52
      %s55 = sphi 0, %s54
      %s69 = sphi 0, %s55
      %s73 = sphi 0, %s73
      %s75 = sphi 0, %s73
      %s76 = sphi 0, %s75
      %s90 = sphi 0, %s76
      %s94 = sphi 0, %s94
      %s96 = sphi 0, %s94
      %s97 = sphi 0, %s96
      %s111 = sphi 0, %s97
      %s115 = sphi 0, %s115
      %s117 = sphi 0, %s115
      %s118 = sphi 0, %s117
      %s132 = sphi 0, %s118
      %s138 = sphi 0, %s140
      %s141 = sphi 0, %s138
      %s142 = sphi 0, %s141
      %s158 = sphi 0, %s142
    $region4: #{tpu_custom_call.1} parent=1 // loop_header_branch
      %21 = sbr.rel (%p19) target = $region8
    $region5: #{tpu_custom_call.1} parent=1 // loop_body
      %s23 = ssub.s32 %s18, 1
      %s24 = ssub.s32 %s18, 2
      %s25 = sadd.s32 %s18, 1
      %s26 = ssub.s32 %s18, %s25
      %p27 = scmp.eq.s32.totalorder %s26, 0
      %s29 = sadd.s32 %s28, 1
      %s30 = scalar_select %p27, %s28, %s29
      %p33 = pneg %p27
      %p34 = scmp.eq.s32.totalorder %s18, 1
      %p35 = por %p33, %p34
      %p36 = scmp.ne.s32.totalorder %s28, %s31
      %p37 = scmp.eq.s32.totalorder %s18, 0
      %p38 = por %p36, %p37
      %p39 = scmp.ne.s32.totalorder %s28, %s31
      %p40 = scmp.eq.s32.totalorder %s23, 1
      %p41 = por %p39, %p40
      %p42 = scmp.ne.s32.totalorder %s31, %s32
      %p43 = scmp.eq.s32.totalorder %s23, 0
      %p44 = por %p42, %p43
      %p45 = scmp.ne.s32.totalorder %s31, %s32
      %p46 = scmp.eq.s32.totalorder %s24, 1
      %p47 = por %p45, %p46
      %p49 = scmp.ne.s32.totalorder %s32, %s48
      %p50 = scmp.eq.s32.totalorder %s24, 0
      %p51 = por %p49, %p50
      %s53 = sadd.s32 %s52, 1
      %p56 = scmp.eq.s32.totalorder %s18, 1
      %p57 = scmp.ne.s32.totalorder %s52, %s54
      %p58 = scmp.eq.s32.totalorder %s18, 0
      %p59 = por %p57, %p58
      %p60 = scmp.ne.s32.totalorder %s52, %s54
      %p61 = scmp.eq.s32.totalorder %s23, 1
      %p62 = por %p60, %p61
      %p63 = scmp.ne.s32.totalorder %s54, %s55
      %p64 = scmp.eq.s32.totalorder %s23, 0
      %p65 = por %p63, %p64
      %p66 = scmp.ne.s32.totalorder %s54, %s55
      %p67 = scmp.eq.s32.totalorder %s24, 1
      %p68 = por %p66, %p67
      %p70 = scmp.ne.s32.totalorder %s55, %s69
      %p71 = scmp.eq.s32.totalorder %s24, 0
      %p72 = por %p70, %p71
      %s74 = sadd.s32 %s73, 1
      %p77 = scmp.eq.s32.totalorder %s18, 1
      %p78 = scmp.ne.s32.totalorder %s73, %s75
      %p79 = scmp.eq.s32.totalorder %s18, 0
      %p80 = por %p78, %p79
      %p81 = scmp.ne.s32.totalorder %s73, %s75
      %p82 = scmp.eq.s32.totalorder %s23, 1
      %p83 = por %p81, %p82
      %p84 = scmp.ne.s32.totalorder %s75, %s76
      %p85 = scmp.eq.s32.totalorder %s23, 0
      %p86 = por %p84, %p85
      %p87 = scmp.ne.s32.totalorder %s75, %s76
      %p88 = scmp.eq.s32.totalorder %s24, 1
      %p89 = por %p87, %p88
      %p91 = scmp.ne.s32.totalorder %s76, %s90
      %p92 = scmp.eq.s32.totalorder %s24, 0
      %p93 = por %p91, %p92
      %s95 = sadd.s32 %s94, 1
      %p98 = scmp.eq.s32.totalorder %s18, 1
      %p99 = scmp.ne.s32.totalorder %s94, %s96
      %p100 = scmp.eq.s32.totalorder %s18, 0
      %p101 = por %p99, %p100
      %p102 = scmp.ne.s32.totalorder %s94, %s96
      %p103 = scmp.eq.s32.totalorder %s23, 1
      %p104 = por %p102, %p103
      %p105 = scmp.ne.s32.totalorder %s96, %s97
      %p106 = scmp.eq.s32.totalorder %s23, 0
      %p107 = por %p105, %p106
      %p108 = scmp.ne.s32.totalorder %s96, %s97
      %p109 = scmp.eq.s32.totalorder %s24, 1
      %p110 = por %p108, %p109
      %p112 = scmp.ne.s32.totalorder %s97, %s111
      %p113 = scmp.eq.s32.totalorder %s24, 0
      %p114 = por %p112, %p113
      %s116 = sadd.s32 %s115, 1
      %p119 = scmp.eq.s32.totalorder %s18, 1
      %p120 = scmp.ne.s32.totalorder %s115, %s117
      %p121 = scmp.eq.s32.totalorder %s18, 0
      %p122 = por %p120, %p121
      %p123 = scmp.ne.s32.totalorder %s115, %s117
      %p124 = scmp.eq.s32.totalorder %s23, 1
      %p125 = por %p123, %p124
      %p126 = scmp.ne.s32.totalorder %s117, %s118
      %p127 = scmp.eq.s32.totalorder %s23, 0
      %p128 = por %p126, %p127
      %p129 = scmp.ne.s32.totalorder %s117, %s118
      %p130 = scmp.eq.s32.totalorder %s24, 1
      %p131 = por %p129, %p130
      %p133 = scmp.ne.s32.totalorder %s118, %s132
      %p134 = scmp.eq.s32.totalorder %s24, 0
      %p135 = por %p133, %p134
      %s136 = ssub.s32 %s18, %s25
      %p137 = scmp.eq.s32.totalorder %s136, 0
      %s139 = sadd.s32 %s138, 1
      %s140 = scalar_select %p137, %s138, %s139
      %p143 = pneg %p137
      %p144 = scmp.eq.s32.totalorder %s18, 1
      %p145 = por %p143, %p144
      %p146 = scmp.ne.s32.totalorder %s138, %s141
      %p147 = scmp.eq.s32.totalorder %s18, 0
      %p148 = por %p146, %p147
      %p149 = scmp.ne.s32.totalorder %s138, %s141
      %p150 = scmp.eq.s32.totalorder %s23, 1
      %p151 = por %p149, %p150
      %p152 = scmp.ne.s32.totalorder %s141, %s142
      %p153 = scmp.eq.s32.totalorder %s23, 0
      %p154 = por %p152, %p153
      %p155 = scmp.ne.s32.totalorder %s141, %s142
      %p156 = scmp.eq.s32.totalorder %s24, 1
      %p157 = por %p155, %p156
      %p159 = scmp.ne.s32.totalorder %s142, %s158
      %p160 = scmp.eq.s32.totalorder %s24, 0
      %p161 = por %p159, %p160
      %p162 = scmp.le.s32.totalorder 1, %s18
      %p163 = scmp.lt.s32.totalorder %s18, 3
      %p164 = pnand %p162, %p163
      %p165 = pneg %p164
      // Predicated region
      $region9: #{tpu_custom_call.1} parent=5 // pred_check
        _
      $region10: #{tpu_custom_call.1} parent=5 // pred_check_branch
        %167 = sbr.rel (%p164) target = $region12
      $region11: #{tpu_custom_call.1} parent=5 // pred_region
        %s168 = ssub.s32 %s18, 1
        // Predicated region
        $region13: #{tpu_custom_call.1} parent=11 // pred_check
          %p169 = pneg %p65
        $region14: #{tpu_custom_call.1} parent=11 // pred_check_branch
          %171 = sbr.rel (%p169) target = $region16
        $region15: #{tpu_custom_call.1} parent=11 // pred_region
          %s173 = ssub.s32 2048, 2048
          %174 = vsyncadd [#allocation6], %s173
          %s175 = sshll.u32 [#allocation5], 4
          %s176 = int_to_ptr.vmem [resolvable:$true] %s175
          %181 = dma.hbm_to_vmem [thread:$0]  %s1, 2048, %s176, [#allocation6], 128, 128, 8
        $region16: #{tpu_custom_call.1} parent=11 // pred_fallthru
          _
        // Predicated region
        $region17: #{tpu_custom_call.1} parent=11 // pred_check
          %p182 = pneg %p86
        $region18: #{tpu_custom_call.1} parent=11 // pred_check_branch
          %184 = sbr.rel (%p182) target = $region20
        $region19: #{tpu_custom_call.1} parent=11 // pred_region
          _
        $region20: #{tpu_custom_call.1} parent=11 // pred_fallthru
          _
        // Predicated region
        $region21: #{tpu_custom_call.1} parent=11 // pred_check
          %p185 = pneg %p107
        $region22: #{tpu_custom_call.1} parent=11 // pred_check_branch
          %187 = sbr.rel (%p185) target = $region24
        $region23: #{tpu_custom_call.1} parent=11 // pred_region
          %s189 = ssub.s32 2048, 2048
          %190 = vsyncadd [#allocation6], %s189
          %s191 = sshll.u32 [#allocation7], 4
          %s192 = int_to_ptr.vmem [resolvable:$true] %s191
          %197 = dma.hbm_to_vmem [thread:$0]  %s3, 2048, %s192, [#allocation6], 128, 128, 8
        $region24: #{tpu_custom_call.1} parent=11 // pred_fallthru
          _
        // Predicated region
        $region25: #{tpu_custom_call.1} parent=11 // pred_check
          %p198 = pneg %p128
        $region26: #{tpu_custom_call.1} parent=11 // pred_check_branch
          %200 = sbr.rel (%p198) target = $region28
        $region27: #{tpu_custom_call.1} parent=11 // pred_region
          _
        $region28: #{tpu_custom_call.1} parent=11 // pred_fallthru
          _
      $region12: #{tpu_custom_call.1} parent=5 // pred_fallthru
        _
      %p201 = scmp.lt.s32.totalorder %s18, 2
      // Predicated region
      $region29: #{tpu_custom_call.1} parent=5 // pred_check
        %p202 = pneg %p201
      $region30: #{tpu_custom_call.1} parent=5 // pred_check_branch
        %204 = sbr.rel (%p202) target = $region32
      $region31: #{tpu_custom_call.1} parent=5 // pred_region
        // Predicated region
        $region33: #{tpu_custom_call.1} parent=31 // pred_check
          %p205 = pneg %p38
        $region34: #{tpu_custom_call.1} parent=31 // pred_check_branch
          %207 = sbr.rel (%p205) target = $region36
        $region35: #{tpu_custom_call.1} parent=31 // pred_region
          %s208 = sand.u32 %s28, 1
          %s209 = scalar_lea.sflag [#allocation3], %s208
          %s210 = sand.u32 %s28, 1
          %s211 = smul.addr %s210, 64
          %s212 = scalar_lea.vmem [#allocation2], %s211
          %s213 = smul.u32 8, %s18
          %s215 = ssub.s32 1024, 1024
          %216 = vsyncadd %s209, %s215
          %s217 = smul.addr %s213, 128
          %s218 = scalar_lea.hbm %s0, %s217
          %s219 = sshll.u32 %s212, 4
          %s220 = int_to_ptr.vmem [resolvable:$true] %s219
          %225 = dma.hbm_to_vmem [thread:$0]  %s218, 1024, %s220, %s209, 128, 128, 8
        $region36: #{tpu_custom_call.1} parent=31 // pred_fallthru
          _
      $region32: #{tpu_custom_call.1} parent=5 // pred_fallthru
        _
      %p226 = scmp.le.s32.totalorder 1, %s18
      %p227 = scmp.lt.s32.totalorder %s18, 3
      %p228 = pnand %p226, %p227
      %p229 = pneg %p228
      // Predicated region
      $region37: #{tpu_custom_call.1} parent=5 // pred_check
        _
      $region38: #{tpu_custom_call.1} parent=5 // pred_check_branch
        %231 = sbr.rel (%p228) target = $region40
      $region39: #{tpu_custom_call.1} parent=5 // pred_region
        %s232 = ssub.s32 %s18, 1
        %s233 = sand.u32 %s31, 1
        %s234 = scalar_lea.sflag [#allocation3], %s233
        %s235 = sand.u32 %s31, 1
        %s236 = smul.addr %s235, 64
        %s237 = scalar_lea.vmem [#allocation2], %s236
        // Predicated region
        $region41: #{tpu_custom_call.1} parent=39 // pred_check
          %p238 = pneg %p44
        $region42: #{tpu_custom_call.1} parent=39 // pred_check_branch
          %240 = sbr.rel (%p238) target = $region44
        $region43: #{tpu_custom_call.1} parent=39 // pred_region
          %241 = dma.done %s234, 1024
        $region44: #{tpu_custom_call.1} parent=39 // pred_fallthru
          _
        // Predicated region
        $region45: #{tpu_custom_call.1} parent=39 // pred_check
          %p242 = pneg %p65
        $region46: #{tpu_custom_call.1} parent=39 // pred_check_branch
          %244 = sbr.rel (%p242) target = $region48
        $region47: #{tpu_custom_call.1} parent=39 // pred_region
          %245 = dma.done [#allocation6], 2048
        $region48: #{tpu_custom_call.1} parent=39 // pred_fallthru
          _
        // Predicated region
        $region49: #{tpu_custom_call.1} parent=39 // pred_check
          %p246 = pneg %p107
        $region50: #{tpu_custom_call.1} parent=39 // pred_check_branch
          %248 = sbr.rel (%p246) target = $region52
        $region51: #{tpu_custom_call.1} parent=39 // pred_region
          %249 = dma.done [#allocation6], 2048
        $region52: #{tpu_custom_call.1} parent=39 // pred_fallthru
          _
        %s250 = sand.u32 %s31, 1
        %s251 = scalar_lea.sflag [#allocation3], %s250
        %s252 = sand.u32 %s31, 1
        %s253 = smul.addr %s252, 64
        %s254 = scalar_lea.vmem [#allocation2], %s253
        %p255 = pneg %p44
        %p256 = pneg %p41
        %p257 = pneg %p65
        %p258 = pneg %p62
        %p259 = pneg %p86
        %p260 = pneg %p83
        %p261 = pneg %p107
        %p262 = pneg %p104
        %p263 = pneg %p128
        %p264 = pneg %p125
        %p265 = pneg %p154
        %p266 = pneg %p151
        %s267 = sand.u32 %s141, 1
        %s268 = scalar_lea.sflag [#allocation4], %s267
        %s269 = sand.u32 %s141, 1
        %s270 = smul.addr %s269, 64
        %s271 = scalar_lea.vmem [#allocation8], %s270
        %s272 = smul.u32 8, %s23
        %s273 = smul.u32 8, %s23
        %v274 = vld [vmem:[%s237] sm:$0xff]
        %v275 = vld [vmem:[%s237 + $0x8] sm:$0xff]
        %v276 = vld [vmem:[%s237 + $0x10] sm:$0xff]
        %v277 = vld [vmem:[%s237 + $0x18] sm:$0xff]
        %v278 = vld [vmem:[%s237 + $0x20] sm:$0xff]
        %v279 = vld [vmem:[%s237 + $0x28] sm:$0xff]
        %v280 = vld [vmem:[%s237 + $0x30] sm:$0xff]
        %v281 = vld [vmem:[%s237 + $0x38] sm:$0xff]
        %v282 = vld [vmem:[#allocation5] sm:$0xff]
        %v283 = vld [vmem:[#allocation5 + $0x8] sm:$0xff]
        %v284 = vld [vmem:[#allocation5 + $0x10] sm:$0xff]
        %v285 = vld [vmem:[#allocation5 + $0x18] sm:$0xff]
        %v286 = vld [vmem:[#allocation5 + $0x20] sm:$0xff]
        %v287 = vld [vmem:[#allocation5 + $0x28] sm:$0xff]
        %v288 = vld [vmem:[#allocation5 + $0x30] sm:$0xff]
        %v289 = vld [vmem:[#allocation5 + $0x38] sm:$0xff]
        %v290 = vld [vmem:[#allocation5 + $0x40] sm:$0xff]
        %v291 = vld [vmem:[#allocation5 + $0x48] sm:$0xff]
        %v292 = vld [vmem:[#allocation5 + $0x50] sm:$0xff]
        %v293 = vld [vmem:[#allocation5 + $0x58] sm:$0xff]
        %v294 = vld [vmem:[#allocation5 + $0x60] sm:$0xff]
        %v295 = vld [vmem:[#allocation5 + $0x68] sm:$0xff]
        %v296 = vld [vmem:[#allocation5 + $0x70] sm:$0xff]
        %v297 = vld [vmem:[#allocation5 + $0x78] sm:$0xff]
        %v298 = vld [vmem:[%s2] sm:$0x1]
        %v300 = vlaneseq
        %v301 = vshrl.u32 %v300, 7
        %v302 = vsub.s32 0, %v301
        %v303 = vrot.slane %v298, %v302
        %305 = vmatprep.subr.mxu0 0.0
        %306 = vmatpush1.msra.mxu0 %v297
        %307 = vmatprep.subr.mxu0 0.0
        %308 = vmatpush1.msra.mxu0 %v296
        %309 = vmatprep.subr.mxu0 0.0
        %310 = vmatpush1.msra.mxu0 %v295
        %311 = vmatprep.subr.mxu0 0.0
        %312 = vmatpush1.msra.mxu0 %v294
        %313 = vmatprep.subr.mxu0 0.0
        %314 = vmatpush1.msra.mxu0 %v293
        %315 = vmatprep.subr.mxu0 0.0
        %316 = vmatpush1.msra.mxu0 %v292
        %317 = vmatprep.subr.mxu0 0.0
        %318 = vmatpush1.msra.mxu0 %v291
        %319 = vmatprep.subr.mxu0 0.0
        %320 = vmatpush1.msra.mxu0 %v290
        %321 = vmatprep.subr.mxu0 0.0
        %322 = vmatpush1.msra.mxu0 %v289
        %323 = vmatprep.subr.mxu0 0.0
        %324 = vmatpush1.msra.mxu0 %v288
        %325 = vmatprep.subr.mxu0 0.0
        %326 = vmatpush1.msra.mxu0 %v287
        %327 = vmatprep.subr.mxu0 0.0
        %328 = vmatpush1.msra.mxu0 %v286
        %329 = vmatprep.subr.mxu0 0.0
        %330 = vmatpush1.msra.mxu0 %v285
        %331 = vmatprep.subr.mxu0 0.0
        %332 = vmatpush1.msra.mxu0 %v284
        %333 = vmatprep.subr.mxu0 0.0
        %334 = vmatpush1.msra.mxu0 %v283
        %335 = vmatprep.subr.mxu0 0.0
        %336 = vmatpush1.msra.mxu0 %v282
        %337 = vmatprep.subr.mxu0 0.0
        %338 = vmatpush2.msra.mxu0 0.0
        %339 = vmatprep.subr.mxu0 0.0
        %340 = vmatpush2.msra.mxu0 0.0
        %341 = vmatprep.subr.mxu0 0.0
        %342 = vmatpush2.msra.mxu0 0.0
        %343 = vmatprep.subr.mxu0 0.0
        %344 = vmatpush2.msra.mxu0 0.0
        %345 = vmatprep.subr.mxu0 0.0
        %346 = vmatpush2.msra.mxu0 0.0
        %347 = vmatprep.subr.mxu0 0.0
        %348 = vmatpush2.msra.mxu0 0.0
        %349 = vmatprep.subr.mxu0 0.0
        %350 = vmatpush2.msra.mxu0 0.0
        %351 = vmatprep.subr.mxu0 0.0
        %352 = vmatpush2.msra.mxu0 0.0
        %353 = vmatprep.subr.mxu0 0.0
        %354 = vmatpush2.msra.mxu0 0.0
        %355 = vmatprep.subr.mxu0 0.0
        %356 = vmatpush2.msra.mxu0 0.0
        %357 = vmatprep.subr.mxu0 0.0
        %358 = vmatpush2.msra.mxu0 0.0
        %359 = vmatprep.subr.mxu0 0.0
        %360 = vmatpush2.msra.mxu0 0.0
        %361 = vmatprep.subr.mxu0 0.0
        %362 = vmatpush2.msra.mxu0 0.0
        %363 = vmatprep.subr.mxu0 0.0
        %364 = vmatpush2.msra.mxu0 0.0
        %365 = vmatprep.subr.mxu0 0.0
        %366 = vmatpush2.msra.mxu0 0.0
        %367 = vmatprep.subr.mxu0 0.0
        %368 = vmatpush2.msra.mxu0 0.0
        %369 = vmatprep.mubr.f32.mxu0 0.0
        %370 = vmatmul.mubr.f32.gmra.mxu0 %v274
        %v371 = vpop.f32.mrf.mxu0
        %v372 = vadd.f32 %v303, %v371
        %v373 = vpop.f32.mrf.mxu0
        %374 = vmatprep.mubr.f32.mxu0 0.0
        %375 = vmatmul.mubr.f32.gmra.mxu0 %v275
        %v376 = vpop.f32.mrf.mxu0
        %v377 = vadd.f32 %v303, %v376
        %v378 = vpop.f32.mrf.mxu0
        %379 = vmatprep.mubr.f32.mxu0 0.0
        %380 = vmatmul.mubr.f32.gmra.mxu0 %v276
        %v381 = vpop.f32.mrf.mxu0
        %v382 = vadd.f32 %v303, %v381
        %v383 = vpop.f32.mrf.mxu0
        %384 = vmatprep.mubr.f32.mxu0 0.0
        %385 = vmatmul.mubr.f32.gmra.mxu0 %v277
        %v386 = vpop.f32.mrf.mxu0
        %v387 = vadd.f32 %v303, %v386
        %v388 = vpop.f32.mrf.mxu0
        %389 = vmatprep.mubr.f32.mxu0 0.0
        %390 = vmatmul.mubr.f32.gmra.mxu0 %v278
        %v391 = vpop.f32.mrf.mxu0
        %v392 = vadd.f32 %v303, %v391
        %v393 = vpop.f32.mrf.mxu0
        %394 = vmatprep.mubr.f32.mxu0 0.0
        %395 = vmatmul.mubr.f32.gmra.mxu0 %v279
        %v396 = vpop.f32.mrf.mxu0
        %v397 = vadd.f32 %v303, %v396
        %v398 = vpop.f32.mrf.mxu0
        %399 = vmatprep.mubr.f32.mxu0 0.0
        %400 = vmatmul.mubr.f32.gmra.mxu0 %v280
        %v401 = vpop.f32.mrf.mxu0
        %v402 = vadd.f32 %v303, %v401
        %v403 = vpop.f32.mrf.mxu0
        %404 = vmatprep.mubr.f32.mxu0 0.0
        %405 = vmatmul.mubr.f32.gmra.mxu0 %v281
        %v406 = vpop.f32.mrf.mxu0
        %v407 = vadd.f32 %v303, %v406
        %v408 = vpop.f32.mrf.mxu0
        %409 = vdwg.mxu0
        %v410 = vmul.f32 %v372, 0.5
        %v411 = vmul.f32 %v377, 0.5
        %v412 = vmul.f32 %v382, 0.5
        %v413 = vmul.f32 %v387, 0.5
        %v414 = vmul.f32 %v392, 0.5
        %v415 = vmul.f32 %v397, 0.5
        %v416 = vmul.f32 %v402, 0.5
        %v417 = vmul.f32 %v407, 0.5
        %v418 = vmul.f32 %v372, 0.70710677
        %v419 = vmul.f32 %v377, 0.70710677
        %v420 = vmul.f32 %v382, 0.70710677
        %v421 = vmul.f32 %v387, 0.70710677
        %v422 = vmul.f32 %v392, 0.70710677
        %v423 = vmul.f32 %v397, 0.70710677
        %v424 = vmul.f32 %v402, 0.70710677
        %v425 = vmul.f32 %v407, 0.70710677
        %v426 = verf.f32.pop %v418
        %v427 = verf.f32.pop %v419
        %v428 = verf.f32.pop %v420
        %v429 = verf.f32.pop %v421
        %v430 = verf.f32.pop %v422
        %v431 = verf.f32.pop %v423
        %v432 = verf.f32.pop %v424
        %v433 = verf.f32.pop %v425
        %v434 = vadd.f32 %v426, 1.0
        %v435 = vadd.f32 %v427, 1.0
        %v436 = vadd.f32 %v428, 1.0
        %v437 = vadd.f32 %v429, 1.0
        %v438 = vadd.f32 %v430, 1.0
        %v439 = vadd.f32 %v431, 1.0
        %v440 = vadd.f32 %v432, 1.0
        %v441 = vadd.f32 %v433, 1.0
        %v442 = vmul.f32 %v410, %v434
        %v443 = vmul.f32 %v411, %v435
        %v444 = vmul.f32 %v412, %v436
        %v445 = vmul.f32 %v413, %v437
        %v446 = vmul.f32 %v414, %v438
        %v447 = vmul.f32 %v415, %v439
        %v448 = vmul.f32 %v416, %v440
        %v449 = vmul.f32 %v417, %v441
        %v450 = vld [vmem:[#allocation7] sm:$0xff]
        %v451 = vld [vmem:[#allocation7 + $0x8] sm:$0xff]
        %v452 = vld [vmem:[#allocation7 + $0x10] sm:$0xff]
        %v453 = vld [vmem:[#allocation7 + $0x18] sm:$0xff]
        %v454 = vld [vmem:[#allocation7 + $0x20] sm:$0xff]
        %v455 = vld [vmem:[#allocation7 + $0x28] sm:$0xff]
        %v456 = vld [vmem:[#allocation7 + $0x30] sm:$0xff]
        %v457 = vld [vmem:[#allocation7 + $0x38] sm:$0xff]
        %v458 = vld [vmem:[#allocation7 + $0x40] sm:$0xff]
        %v459 = vld [vmem:[#allocation7 + $0x48] sm:$0xff]
        %v460 = vld [vmem:[#allocation7 + $0x50] sm:$0xff]
        %v461 = vld [vmem:[#allocation7 + $0x58] sm:$0xff]
        %v462 = vld [vmem:[#allocation7 + $0x60] sm:$0xff]
        %v463 = vld [vmem:[#allocation7 + $0x68] sm:$0xff]
        %v464 = vld [vmem:[#allocation7 + $0x70] sm:$0xff]
        %v465 = vld [vmem:[#allocation7 + $0x78] sm:$0xff]
        %v466 = vld [vmem:[%s4] sm:$0x1]
        %v468 = vlaneseq
        %v469 = vshrl.u32 %v468, 7
        %v470 = vsub.s32 0, %v469
        %v471 = vrot.slane %v466, %v470
        %473 = vmatprep.subr.mxu0 0.0
        %474 = vmatpush1.msra.mxu0 %v465
        %475 = vmatprep.subr.mxu0 0.0
        %476 = vmatpush1.msra.mxu0 %v464
        %477 = vmatprep.subr.mxu0 0.0
        %478 = vmatpush1.msra.mxu0 %v463
        %479 = vmatprep.subr.mxu0 0.0
        %480 = vmatpush1.msra.mxu0 %v462
        %481 = vmatprep.subr.mxu0 0.0
        %482 = vmatpush1.msra.mxu0 %v461
        %483 = vmatprep.subr.mxu0 0.0
        %484 = vmatpush1.msra.mxu0 %v460
        %485 = vmatprep.subr.mxu0 0.0
        %486 = vmatpush1.msra.mxu0 %v459
        %487 = vmatprep.subr.mxu0 0.0
        %488 = vmatpush1.msra.mxu0 %v458
        %489 = vmatprep.subr.mxu0 0.0
        %490 = vmatpush1.msra.mxu0 %v457
        %491 = vmatprep.subr.mxu0 0.0
        %492 = vmatpush1.msra.mxu0 %v456
        %493 = vmatprep.subr.mxu0 0.0
        %494 = vmatpush1.msra.mxu0 %v455
        %495 = vmatprep.subr.mxu0 0.0
        %496 = vmatpush1.msra.mxu0 %v454
        %497 = vmatprep.subr.mxu0 0.0
        %498 = vmatpush1.msra.mxu0 %v453
        %499 = vmatprep.subr.mxu0 0.0
        %500 = vmatpush1.msra.mxu0 %v452
        %501 = vmatprep.subr.mxu0 0.0
        %502 = vmatpush1.msra.mxu0 %v451
        %503 = vmatprep.subr.mxu0 0.0
        %504 = vmatpush1.msra.mxu0 %v450
        %505 = vmatprep.subr.mxu0 0.0
        %506 = vmatpush2.msra.mxu0 0.0
        %507 = vmatprep.subr.mxu0 0.0
        %508 = vmatpush2.msra.mxu0 0.0
        %509 = vmatprep.subr.mxu0 0.0
        %510 = vmatpush2.msra.mxu0 0.0
        %511 = vmatprep.subr.mxu0 0.0
        %512 = vmatpush2.msra.mxu0 0.0
        %513 = vmatprep.subr.mxu0 0.0
        %514 = vmatpush2.msra.mxu0 0.0
        %515 = vmatprep.subr.mxu0 0.0
        %516 = vmatpush2.msra.mxu0 0.0
        %517 = vmatprep.subr.mxu0 0.0
        %518 = vmatpush2.msra.mxu0 0.0
        %519 = vmatprep.subr.mxu0 0.0
        %520 = vmatpush2.msra.mxu0 0.0
        %521 = vmatprep.subr.mxu0 0.0
        %522 = vmatpush2.msra.mxu0 0.0
        %523 = vmatprep.subr.mxu0 0.0
        %524 = vmatpush2.msra.mxu0 0.0
        %525 = vmatprep.subr.mxu0 0.0
        %526 = vmatpush2.msra.mxu0 0.0
        %527 = vmatprep.subr.mxu0 0.0
        %528 = vmatpush2.msra.mxu0 0.0
        %529 = vmatprep.subr.mxu0 0.0
        %530 = vmatpush2.msra.mxu0 0.0
        %531 = vmatprep.subr.mxu0 0.0
        %532 = vmatpush2.msra.mxu0 0.0
        %533 = vmatprep.subr.mxu0 0.0
        %534 = vmatpush2.msra.mxu0 0.0
        %535 = vmatprep.subr.mxu0 0.0
        %536 = vmatpush2.msra.mxu0 0.0
        %537 = vmatprep.mubr.f32.mxu0 0.0
        %538 = vmatmul.mubr.f32.gmra.mxu0 %v442
        %v539 = vpop.f32.mrf.mxu0
        %v540 = vadd.f32 %v471, %v539
        %v541 = vpop.f32.mrf.mxu0
        %542 = vmatprep.mubr.f32.mxu0 0.0
        %543 = vmatmul.mubr.f32.gmra.mxu0 %v443
        %v544 = vpop.f32.mrf.mxu0
        %v545 = vadd.f32 %v471, %v544
        %v546 = vpop.f32.mrf.mxu0
        %547 = vmatprep.mubr.f32.mxu0 0.0
        %548 = vmatmul.mubr.f32.gmra.mxu0 %v444
        %v549 = vpop.f32.mrf.mxu0
        %v550 = vadd.f32 %v471, %v549
        %v551 = vpop.f32.mrf.mxu0
        %552 = vmatprep.mubr.f32.mxu0 0.0
        %553 = vmatmul.mubr.f32.gmra.mxu0 %v445
        %v554 = vpop.f32.mrf.mxu0
        %v555 = vadd.f32 %v471, %v554
        %v556 = vpop.f32.mrf.mxu0
        %557 = vmatprep.mubr.f32.mxu0 0.0
        %558 = vmatmul.mubr.f32.gmra.mxu0 %v446
        %v559 = vpop.f32.mrf.mxu0
        %v560 = vadd.f32 %v471, %v559
        %v561 = vpop.f32.mrf.mxu0
        %562 = vmatprep.mubr.f32.mxu0 0.0
        %563 = vmatmul.mubr.f32.gmra.mxu0 %v447
        %v564 = vpop.f32.mrf.mxu0
        %v565 = vadd.f32 %v471, %v564
        %v566 = vpop.f32.mrf.mxu0
        %567 = vmatprep.mubr.f32.mxu0 0.0
        %568 = vmatmul.mubr.f32.gmra.mxu0 %v448
        %v569 = vpop.f32.mrf.mxu0
        %v570 = vadd.f32 %v471, %v569
        %v571 = vpop.f32.mrf.mxu0
        %572 = vmatprep.mubr.f32.mxu0 0.0
        %573 = vmatmul.mubr.f32.gmra.mxu0 %v449
        %v574 = vpop.f32.mrf.mxu0
        %v575 = vadd.f32 %v471, %v574
        %v576 = vpop.f32.mrf.mxu0
        %577 = vdwg.mxu0
        %578 = vst [vmem:[%s271] sm:$0xff] %v540
        %579 = vst [vmem:[%s271 + $0x8] sm:$0xff] %v545
        %580 = vst [vmem:[%s271 + $0x10] sm:$0xff] %v550
        %581 = vst [vmem:[%s271 + $0x18] sm:$0xff] %v555
        %582 = vst [vmem:[%s271 + $0x20] sm:$0xff] %v560
        %583 = vst [vmem:[%s271 + $0x28] sm:$0xff] %v565
        %584 = vst [vmem:[%s271 + $0x30] sm:$0xff] %v570
        %585 = vst [vmem:[%s271 + $0x38] sm:$0xff] %v575
        %s586 = sand.u32 %s141, 1
        %s587 = scalar_lea.sflag [#allocation4], %s586
        %s588 = sand.u32 %s141, 1
        %s589 = smul.addr %s588, 64
        %s590 = scalar_lea.vmem [#allocation8], %s589
        // Predicated region
        $region53: #{tpu_custom_call.1} parent=39 // pred_check
          %p591 = pneg %p151
        $region54: #{tpu_custom_call.1} parent=39 // pred_check_branch
          %593 = sbr.rel (%p591) target = $region56
        $region55: #{tpu_custom_call.1} parent=39 // pred_region
          %s594 = smul.u32 8, %s23
          %s596 = ssub.s32 1024, 1024
          %597 = vsyncadd %s587, %s596
          %s598 = smul.addr %s594, 128
          %s599 = scalar_lea.hbm %s5, %s598
          %s600 = sshll.u32 %s590, 4
          %s601 = int_to_ptr.vmem [resolvable:$true] %s600
          %606 = dma.vmem_to_hbm [thread:$0]  %s601, 1024, %s599, %s587, 128, 128, 8
        $region56: #{tpu_custom_call.1} parent=39 // pred_fallthru
          _
      $region40: #{tpu_custom_call.1} parent=5 // pred_fallthru
        _
      %p607 = scmp.le.s32.totalorder 2, %s18
      // Predicated region
      $region57: #{tpu_custom_call.1} parent=5 // pred_check
        %p608 = pneg %p607
      $region58: #{tpu_custom_call.1} parent=5 // pred_check_branch
        %610 = sbr.rel (%p608) target = $region60
      $region59: #{tpu_custom_call.1} parent=5 // pred_region
        %s611 = ssub.s32 %s18, 2
        // Predicated region
        $region61: #{tpu_custom_call.1} parent=59 // pred_check
          %p612 = pneg %p157
        $region62: #{tpu_custom_call.1} parent=59 // pred_check_branch
          %614 = sbr.rel (%p612) target = $region64
        $region63: #{tpu_custom_call.1} parent=59 // pred_region
          %s615 = sand.u32 %s142, 1
          %s616 = scalar_lea.sflag [#allocation4], %s615
          %s617 = sand.u32 %s142, 1
          %s618 = smul.addr %s617, 64
          %s619 = scalar_lea.vmem [#allocation8], %s618
          %620 = dma.done %s616, 1024
        $region64: #{tpu_custom_call.1} parent=59 // pred_fallthru
          _
      $region60: #{tpu_custom_call.1} parent=5 // pred_fallthru
        _
    $region6: #{tpu_custom_call.1} parent=1 // loop_footer
      %s22 = sadd.s32 1, %s18
    $region7: #{tpu_custom_call.1} parent=1 // loop_footer_branch
      %17 = sbr.rel target = $region3
    $region8: #{tpu_custom_call.1} parent=1 // loop_exit
      _
    %621 = vsyncpa [#allocation3], 1
    %s622 = scalar_lea.sflag [#allocation3], 1
    %623 = vsyncpa %s622, 1
    %624 = vsyncpa [#allocation6], 1
    %625 = vsyncpa [#allocation4], 1
    %s626 = scalar_lea.sflag [#allocation4], 1
    %627 = vsyncpa %s626, 1

// kernel: tpu_custom_call.1
$region0: #{tpu_custom_call.1}
  #allocation0 [shape = 'u32[]', space=smem, size = 0x4, offset = 0x4, fixed_abs, tag = 'smem constant byte address 0x4 - core index']
  #allocation1 [shape = 'u32[144,128]{1,0:T(1,128)}', space=vmem, size = 0x12000, scoped, tag = 'internal scratch']
  %s0 = inlined_call_operand.hbm [shape: f32[128,128], index: 0, kind: input, shape index: {}]
  %s1 = inlined_call_operand.hbm [shape: f32[128,128], index: 1, kind: input, shape index: {}]
  %s2 = inlined_call_operand.vmem [shape: f32[1,128], index: 2, kind: input, shape index: {}]
  %s3 = inlined_call_operand.hbm [shape: f32[128,128], index: 3, kind: input, shape index: {}]
  %s4 = inlined_call_operand.vmem [shape: f32[1,128], index: 4, kind: input, shape index: {}]
  %s5 = inlined_call_operand.hbm [shape: f32[128,128], index: 5, kind: output, shape index: {}]
  %s6 = sld [smem:[#allocation0]]
  $region65: #{tpu_custom_call.1} parent=0
    _
  %s8 = ssub.s32 1, %s6
  %s9 = scalar_select 0, %s8, %s6
  $region1: #{tpu_custom_call.1} parent=0
    #allocation2 [shape = 'u8[65536]{0}', space=vmem, size = 0x10000, scoped, tag = 'input window, operand 0']
    #allocation3 [shape = 's32[2]{0}', space=sflag, size = 0x8, scoped, tag = 'scoped memory for tpu_custom_call.1']
    #allocation4 [shape = 's32[2]{0}', space=sflag, size = 0x8, scoped, tag = 'scoped memory for tpu_custom_call.1']
    #allocation5 [shape = 'u8[65536]{0}', space=vmem, size = 0x10000, scoped, tag = 'input window, operand 1, single buffered']
    #allocation6 [shape = 's32[1]{0}', space=sflag, size = 0x4, scoped, tag = 'scoped memory for tpu_custom_call.1']
    #allocation7 [shape = 'u8[65536]{0}', space=vmem, size = 0x10000, scoped, tag = 'input window, operand 3, single buffered']
    #allocation8 [shape = 'u8[65536]{0}', space=vmem, size = 0x10000, scoped, tag = 'output window, operand 0']
    %10 = vsyncpa [#allocation3], 0
    %s11 = scalar_lea.sflag [#allocation3], 1
    %12 = vsyncpa %s11, 0
    %13 = vsyncpa [#allocation6], 0
    %14 = vsyncpa [#allocation4], 0
    %s15 = scalar_lea.sflag [#allocation4], 1
    %16 = vsyncpa %s15, 0
    loop: start=0, step=1, limit=4
    $region2: #{tpu_custom_call.1} parent=1 // loop_pre_header
      _
    $region3: #{tpu_custom_call.1} parent=1 // loop_header
      %s18 = sphi 0, %s22
      %p19 = scmp.ge.s32.totalorder %s18, 4
      %s28 = sphi 0, %s30
      %s31 = sphi 0, %s28
      %s32 = sphi 0, %s31
      %s48 = sphi 0, %s32
      %s52 = sphi 0, %s52
      %s54 = sphi 0, %s52
      %s55 = sphi 0, %s54
      %s69 = sphi 0, %s55
      %s73 = sphi 0, %s73
      %s75 = sphi 0, %s73
      %s76 = sphi 0, %s75
      %s90 = sphi 0, %s76
      %s94 = sphi 0, %s94
      %s96 = sphi 0, %s94
      %s97 = sphi 0, %s96
      %s111 = sphi 0, %s97
      %s115 = sphi 0, %s115
      %s117 = sphi 0, %s115
      %s118 = sphi 0, %s117
      %s132 = sphi 0, %s118
      %s138 = sphi 0, %s140
      %s141 = sphi 0, %s138
      %s142 = sphi 0, %s141
      %s158 = sphi 0, %s142
    $region4: #{tpu_custom_call.1} parent=1 // loop_header_branch
      %21 = sbr.rel (%p19) target = $region8
    $region5: #{tpu_custom_call.1} parent=1 // loop_body
      %s23 = ssub.s32 %s18, 1
      %s24 = ssub.s32 %s18, 2
      %s25 = sadd.s32 %s18, 1
      %s26 = ssub.s32 %s18, %s25
      %p27 = scmp.eq.s32.totalorder %s26, 0
      %s29 = sadd.s32 %s28, 1
      %s30 = scalar_select %p27, %s28, %s29
      %p33 = pneg %p27
      %p34 = scmp.eq.s32.totalorder %s18, 1
      %p35 = por %p33, %p34
      %p36 = scmp.ne.s32.totalorder %s28, %s31
      %p37 = scmp.eq.s32.totalorder %s18, 0
      %p38 = por %p36, %p37
      %p39 = scmp.ne.s32.totalorder %s28, %s31
      %p40 = scmp.eq.s32.totalorder %s23, 1
      %p41 = por %p39, %p40
      %p42 = scmp.ne.s32.totalorder %s31, %s32
      %p43 = scmp.eq.s32.totalorder %s23, 0
      %p44 = por %p42, %p43
      %p45 = scmp.ne.s32.totalorder %s31, %s32
      %p46 = scmp.eq.s32.totalorder %s24, 1
      %p47 = por %p45, %p46
      %p49 = scmp.ne.s32.totalorder %s32, %s48
      %p50 = scmp.eq.s32.totalorder %s24, 0
      %p51 = por %p49, %p50
      %s53 = sadd.s32 %s52, 1
      %p56 = scmp.eq.s32.totalorder %s18, 1
      %p57 = scmp.ne.s32.totalorder %s52, %s54
      %p58 = scmp.eq.s32.totalorder %s18, 0
      %p59 = por %p57, %p58
      %p60 = scmp.ne.s32.totalorder %s52, %s54
      %p61 = scmp.eq.s32.totalorder %s23, 1
      %p62 = por %p60, %p61
      %p63 = scmp.ne.s32.totalorder %s54, %s55
      %p64 = scmp.eq.s32.totalorder %s23, 0
      %p65 = por %p63, %p64
      %p66 = scmp.ne.s32.totalorder %s54, %s55
      %p67 = scmp.eq.s32.totalorder %s24, 1
      %p68 = por %p66, %p67
      %p70 = scmp.ne.s32.totalorder %s55, %s69
      %p71 = scmp.eq.s32.totalorder %s24, 0
      %p72 = por %p70, %p71
      %s74 = sadd.s32 %s73, 1
      %p77 = scmp.eq.s32.totalorder %s18, 1
      %p78 = scmp.ne.s32.totalorder %s73, %s75
      %p79 = scmp.eq.s32.totalorder %s18, 0
      %p80 = por %p78, %p79
      %p81 = scmp.ne.s32.totalorder %s73, %s75
      %p82 = scmp.eq.s32.totalorder %s23, 1
      %p83 = por %p81, %p82
      %p84 = scmp.ne.s32.totalorder %s75, %s76
      %p85 = scmp.eq.s32.totalorder %s23, 0
      %p86 = por %p84, %p85
      %p87 = scmp.ne.s32.totalorder %s75, %s76
      %p88 = scmp.eq.s32.totalorder %s24, 1
      %p89 = por %p87, %p88
      %p91 = scmp.ne.s32.totalorder %s76, %s90
      %p92 = scmp.eq.s32.totalorder %s24, 0
      %p93 = por %p91, %p92
      %s95 = sadd.s32 %s94, 1
      %p98 = scmp.eq.s32.totalorder %s18, 1
      %p99 = scmp.ne.s32.totalorder %s94, %s96
      %p100 = scmp.eq.s32.totalorder %s18, 0
      %p101 = por %p99, %p100
      %p102 = scmp.ne.s32.totalorder %s94, %s96
      %p103 = scmp.eq.s32.totalorder %s23, 1
      %p104 = por %p102, %p103
      %p105 = scmp.ne.s32.totalorder %s96, %s97
      %p106 = scmp.eq.s32.totalorder %s23, 0
      %p107 = por %p105, %p106
      %p108 = scmp.ne.s32.totalorder %s96, %s97
      %p109 = scmp.eq.s32.totalorder %s24, 1
      %p110 = por %p108, %p109
      %p112 = scmp.ne.s32.totalorder %s97, %s111
      %p113 = scmp.eq.s32.totalorder %s24, 0
      %p114 = por %p112, %p113
      %s116 = sadd.s32 %s115, 1
      %p119 = scmp.eq.s32.totalorder %s18, 1
      %p120 = scmp.ne.s32.totalorder %s115, %s117
      %p121 = scmp.eq.s32.totalorder %s18, 0
      %p122 = por %p120, %p121
      %p123 = scmp.ne.s32.totalorder %s115, %s117
      %p124 = scmp.eq.s32.totalorder %s23, 1
      %p125 = por %p123, %p124
      %p126 = scmp.ne.s32.totalorder %s117, %s118
      %p127 = scmp.eq.s32.totalorder %s23, 0
      %p128 = por %p126, %p127
      %p129 = scmp.ne.s32.totalorder %s117, %s118
      %p130 = scmp.eq.s32.totalorder %s24, 1
      %p131 = por %p129, %p130
      %p133 = scmp.ne.s32.totalorder %s118, %s132
      %p134 = scmp.eq.s32.totalorder %s24, 0
      %p135 = por %p133, %p134
      %s136 = ssub.s32 %s18, %s25
      %p137 = scmp.eq.s32.totalorder %s136, 0
      %s139 = sadd.s32 %s138, 1
      %s140 = scalar_select %p137, %s138, %s139
      %p143 = pneg %p137
      %p144 = scmp.eq.s32.totalorder %s18, 1
      %p145 = por %p143, %p144
      %p146 = scmp.ne.s32.totalorder %s138, %s141
      %p147 = scmp.eq.s32.totalorder %s18, 0
      %p148 = por %p146, %p147
      %p149 = scmp.ne.s32.totalorder %s138, %s141
      %p150 = scmp.eq.s32.totalorder %s23, 1
      %p151 = por %p149, %p150
      %p152 = scmp.ne.s32.totalorder %s141, %s142
      %p153 = scmp.eq.s32.totalorder %s23, 0
      %p154 = por %p152, %p153
      %p155 = scmp.ne.s32.totalorder %s141, %s142
      %p156 = scmp.eq.s32.totalorder %s24, 1
      %p157 = por %p155, %p156
      %p159 = scmp.ne.s32.totalorder %s142, %s158
      %p160 = scmp.eq.s32.totalorder %s24, 0
      %p161 = por %p159, %p160
      %p162 = scmp.le.s32.totalorder 1, %s18
      %p163 = scmp.lt.s32.totalorder %s18, 3
      %p164 = pnand %p162, %p163
      %p165 = pneg %p164
      // Predicated region
      $region9: #{tpu_custom_call.1} parent=5 // pred_check
        _
      $region10: #{tpu_custom_call.1} parent=5 // pred_check_branch
        %167 = sbr.rel (%p164) target = $region12
      $region11: #{tpu_custom_call.1} parent=5 // pred_region
        %s168 = ssub.s32 %s18, 1
        // Predicated region
        $region13: #{tpu_custom_call.1} parent=11 // pred_check
          %p169 = pneg %p65
        $region14: #{tpu_custom_call.1} parent=11 // pred_check_branch
          %171 = sbr.rel (%p169) target = $region16
        $region15: #{tpu_custom_call.1} parent=11 // pred_region
          %s173 = ssub.s32 2048, 2048
          %174 = vsyncadd [#allocation6], %s173
          %s175 = sshll.u32 [#allocation5], 4
          %s176 = int_to_ptr.vmem [resolvable:$true] %s175
          %181 = dma.hbm_to_vmem [thread:$0]  %s1, 2048, %s176, [#allocation6], 128, 128, 8
        $region16: #{tpu_custom_call.1} parent=11 // pred_fallthru
          _
        // Predicated region
        $region17: #{tpu_custom_call.1} parent=11 // pred_check
          %p182 = pneg %p86
        $region18: #{tpu_custom_call.1} parent=11 // pred_check_branch
          %184 = sbr.rel (%p182) target = $region20
        $region19: #{tpu_custom_call.1} parent=11 // pred_region
          _
        $region20: #{tpu_custom_call.1} parent=11 // pred_fallthru
          _
        // Predicated region
        $region21: #{tpu_custom_call.1} parent=11 // pred_check
          %p185 = pneg %p107
        $region22: #{tpu_custom_call.1} parent=11 // pred_check_branch
          %187 = sbr.rel (%p185) target = $region24
        $region23: #{tpu_custom_call.1} parent=11 // pred_region
          %s189 = ssub.s32 2048, 2048
          %190 = vsyncadd [#allocation6], %s189
          %s191 = sshll.u32 [#allocation7], 4
          %s192 = int_to_ptr.vmem [resolvable:$true] %s191
          %197 = dma.hbm_to_vmem [thread:$0]  %s3, 2048, %s192, [#allocation6], 128, 128, 8
        $region24: #{tpu_custom_call.1} parent=11 // pred_fallthru
          _
        // Predicated region
        $region25: #{tpu_custom_call.1} parent=11 // pred_check
          %p198 = pneg %p128
        $region26: #{tpu_custom_call.1} parent=11 // pred_check_branch
          %200 = sbr.rel (%p198) target = $region28
        $region27: #{tpu_custom_call.1} parent=11 // pred_region
          _
        $region28: #{tpu_custom_call.1} parent=11 // pred_fallthru
          _
      $region12: #{tpu_custom_call.1} parent=5 // pred_fallthru
        _
      %p201 = scmp.lt.s32.totalorder %s18, 2
      // Predicated region
      $region29: #{tpu_custom_call.1} parent=5 // pred_check
        %p202 = pneg %p201
      $region30: #{tpu_custom_call.1} parent=5 // pred_check_branch
        %204 = sbr.rel (%p202) target = $region32
      $region31: #{tpu_custom_call.1} parent=5 // pred_region
        // Predicated region
        $region33: #{tpu_custom_call.1} parent=31 // pred_check
          %p205 = pneg %p38
        $region34: #{tpu_custom_call.1} parent=31 // pred_check_branch
          %207 = sbr.rel (%p205) target = $region36
        $region35: #{tpu_custom_call.1} parent=31 // pred_region
          %s208 = sand.u32 %s28, 1
          %s209 = scalar_lea.sflag [#allocation3], %s208
          %s210 = sand.u32 %s28, 1
          %s211 = smul.addr %s210, 64
          %s212 = scalar_lea.vmem [#allocation2], %s211
          %s213 = smul.u32 8, %s18
          %s215 = ssub.s32 1024, 1024
          %216 = vsyncadd %s209, %s215
          %s217 = smul.addr %s213, 128
          %s218 = scalar_lea.hbm %s0, %s217
          %s219 = sshll.u32 %s212, 4
          %s220 = int_to_ptr.vmem [resolvable:$true] %s219
          %225 = dma.hbm_to_vmem [thread:$0]  %s218, 1024, %s220, %s209, 128, 128, 8
        $region36: #{tpu_custom_call.1} parent=31 // pred_fallthru
          _
      $region32: #{tpu_custom_call.1} parent=5 // pred_fallthru
        _
      %p226 = scmp.le.s32.totalorder 1, %s18
      %p227 = scmp.lt.s32.totalorder %s18, 3
      %p228 = pnand %p226, %p227
      %p229 = pneg %p228
      // Predicated region
      $region37: #{tpu_custom_call.1} parent=5 // pred_check
        _
      $region38: #{tpu_custom_call.1} parent=5 // pred_check_branch
        %231 = sbr.rel (%p228) target = $region40
      $region39: #{tpu_custom_call.1} parent=5 // pred_region
        %s232 = ssub.s32 %s18, 1
        %s233 = sand.u32 %s31, 1
        %s234 = scalar_lea.sflag [#allocation3], %s233
        %s235 = sand.u32 %s31, 1
        %s236 = smul.addr %s235, 64
        %s237 = scalar_lea.vmem [#allocation2], %s236
        // Predicated region
        $region41: #{tpu_custom_call.1} parent=39 // pred_check
          %p238 = pneg %p44
        $region42: #{tpu_custom_call.1} parent=39 // pred_check_branch
          %240 = sbr.rel (%p238) target = $region44
        $region43: #{tpu_custom_call.1} parent=39 // pred_region
          %241 = dma.done %s234, 1024
        $region44: #{tpu_custom_call.1} parent=39 // pred_fallthru
          _
        // Predicated region
        $region45: #{tpu_custom_call.1} parent=39 // pred_check
          %p242 = pneg %p65
        $region46: #{tpu_custom_call.1} parent=39 // pred_check_branch
          %244 = sbr.rel (%p242) target = $region48
        $region47: #{tpu_custom_call.1} parent=39 // pred_region
          %245 = dma.done [#allocation6], 2048
        $region48: #{tpu_custom_call.1} parent=39 // pred_fallthru
          _
        // Predicated region
        $region49: #{tpu_custom_call.1} parent=39 // pred_check
          %p246 = pneg %p107
        $region50: #{tpu_custom_call.1} parent=39 // pred_check_branch
          %248 = sbr.rel (%p246) target = $region52
        $region51: #{tpu_custom_call.1} parent=39 // pred_region
          %249 = dma.done [#allocation6], 2048
        $region52: #{tpu_custom_call.1} parent=39 // pred_fallthru
          _
        %s250 = sand.u32 %s31, 1
        %s251 = scalar_lea.sflag [#allocation3], %s250
        %s252 = sand.u32 %s31, 1
        %s253 = smul.addr %s252, 64
        %s254 = scalar_lea.vmem [#allocation2], %s253
        %p255 = pneg %p44
        %p256 = pneg %p41
        %p257 = pneg %p65
        %p258 = pneg %p62
        %p259 = pneg %p86
        %p260 = pneg %p83
        %p261 = pneg %p107
        %p262 = pneg %p104
        %p263 = pneg %p128
        %p264 = pneg %p125
        %p265 = pneg %p154
        %p266 = pneg %p151
        %s267 = sand.u32 %s141, 1
        %s268 = scalar_lea.sflag [#allocation4], %s267
        %s269 = sand.u32 %s141, 1
        %s270 = smul.addr %s269, 64
        %s271 = scalar_lea.vmem [#allocation8], %s270
        %s272 = smul.u32 8, %s23
        %s273 = smul.u32 8, %s23
        %v274 = vld [vmem:[%s237] sm:$0xff]
        %v275 = vld [vmem:[%s237 + $0x8] sm:$0xff]
        %v276 = vld [vmem:[%s237 + $0x10] sm:$0xff]
        %v277 = vld [vmem:[%s237 + $0x18] sm:$0xff]
        %v278 = vld [vmem:[%s237 + $0x20] sm:$0xff]
        %v279 = vld [vmem:[%s237 + $0x28] sm:$0xff]
        %v280 = vld [vmem:[%s237 + $0x30] sm:$0xff]
        %v281 = vld [vmem:[%s237 + $0x38] sm:$0xff]
        %v282 = vld [vmem:[#allocation5] sm:$0xff]
        %v283 = vld [vmem:[#allocation5 + $0x8] sm:$0xff]
        %v284 = vld [vmem:[#allocation5 + $0x10] sm:$0xff]
        %v285 = vld [vmem:[#allocation5 + $0x18] sm:$0xff]
        %v286 = vld [vmem:[#allocation5 + $0x20] sm:$0xff]
        %v287 = vld [vmem:[#allocation5 + $0x28] sm:$0xff]
        %v288 = vld [vmem:[#allocation5 + $0x30] sm:$0xff]
        %v289 = vld [vmem:[#allocation5 + $0x38] sm:$0xff]
        %v290 = vld [vmem:[#allocation5 + $0x40] sm:$0xff]
        %v291 = vld [vmem:[#allocation5 + $0x48] sm:$0xff]
        %v292 = vld [vmem:[#allocation5 + $0x50] sm:$0xff]
        %v293 = vld [vmem:[#allocation5 + $0x58] sm:$0xff]
        %v294 = vld [vmem:[#allocation5 + $0x60] sm:$0xff]
        %v295 = vld [vmem:[#allocation5 + $0x68] sm:$0xff]
        %v296 = vld [vmem:[#allocation5 + $0x70] sm:$0xff]
        %v297 = vld [vmem:[#allocation5 + $0x78] sm:$0xff]
        %v298 = vld [vmem:[%s2] sm:$0x1]
        %v300 = vlaneseq
        %v301 = vshrl.u32 %v300, 7
        %v302 = vsub.s32 0, %v301
        %v303 = vrot.slane %v298, %v302
        %305 = vmatprep.subr.mxu0 0.0
        %306 = vmatpush1.msra.mxu0 %v297
        %307 = vmatprep.subr.mxu0 0.0
        %308 = vmatpush1.msra.mxu0 %v296
        %309 = vmatprep.subr.mxu0 0.0
        %310 = vmatpush1.msra.mxu0 %v295
        %311 = vmatprep.subr.mxu0 0.0
        %312 = vmatpush1.msra.mxu0 %v294
        %313 = vmatprep.subr.mxu0 0.0
        %314 = vmatpush1.msra.mxu0 %v293
        %315 = vmatprep.subr.mxu0 0.0
        %316 = vmatpush1.msra.mxu0 %v292
        %317 = vmatprep.subr.mxu0 0.0
        %318 = vmatpush1.msra.mxu0 %v291
        %319 = vmatprep.subr.mxu0 0.0
        %320 = vmatpush1.msra.mxu0 %v290
        %321 = vmatprep.subr.mxu0 0.0
        %322 = vmatpush1.msra.mxu0 %v289
        %323 = vmatprep.subr.mxu0 0.0
        %324 = vmatpush1.msra.mxu0 %v288
        %325 = vmatprep.subr.mxu0 0.0
        %326 = vmatpush1.msra.mxu0 %v287
        %327 = vmatprep.subr.mxu0 0.0
        %328 = vmatpush1.msra.mxu0 %v286
        %329 = vmatprep.subr.mxu0 0.0
        %330 = vmatpush1.msra.mxu0 %v285
        %331 = vmatprep.subr.mxu0 0.0
        %332 = vmatpush1.msra.mxu0 %v284
        %333 = vmatprep.subr.mxu0 0.0
        %334 = vmatpush1.msra.mxu0 %v283
        %335 = vmatprep.subr.mxu0 0.0
        %336 = vmatpush1.msra.mxu0 %v282
        %337 = vmatprep.subr.mxu0 0.0
        %338 = vmatpush2.msra.mxu0 0.0
        %339 = vmatprep.subr.mxu0 0.0
        %340 = vmatpush2.msra.mxu0 0.0
        %341 = vmatprep.subr.mxu0 0.0
        %342 = vmatpush2.msra.mxu0 0.0
        %343 = vmatprep.subr.mxu0 0.0
        %344 = vmatpush2.msra.mxu0 0.0
        %345 = vmatprep.subr.mxu0 0.0
        %346 = vmatpush2.msra.mxu0 0.0
        %347 = vmatprep.subr.mxu0 0.0
        %348 = vmatpush2.msra.mxu0 0.0
        %349 = vmatprep.subr.mxu0 0.0
        %350 = vmatpush2.msra.mxu0 0.0
        %351 = vmatprep.subr.mxu0 0.0
        %352 = vmatpush2.msra.mxu0 0.0
        %353 = vmatprep.subr.mxu0 0.0
        %354 = vmatpush2.msra.mxu0 0.0
        %355 = vmatprep.subr.mxu0 0.0
        %356 = vmatpush2.msra.mxu0 0.0
        %357 = vmatprep.subr.mxu0 0.0
        %358 = vmatpush2.msra.mxu0 0.0
        %359 = vmatprep.subr.mxu0 0.0
        %360 = vmatpush2.msra.mxu0 0.0
        %361 = vmatprep.subr.mxu0 0.0
        %362 = vmatpush2.msra.mxu0 0.0
        %363 = vmatprep.subr.mxu0 0.0
        %364 = vmatpush2.msra.mxu0 0.0
        %365 = vmatprep.subr.mxu0 0.0
        %366 = vmatpush2.msra.mxu0 0.0
        %367 = vmatprep.subr.mxu0 0.0
        %368 = vmatpush2.msra.mxu0 0.0
        %369 = vmatprep.mubr.f32.mxu0 0.0
        %370 = vmatmul.mubr.f32.gmra.mxu0 %v274
        %v371 = vpop.f32.mrf.mxu0
        %v372 = vadd.f32 %v303, %v371
        %v373 = vpop.f32.mrf.mxu0
        %374 = vmatprep.mubr.f32.mxu0 0.0
        %375 = vmatmul.mubr.f32.gmra.mxu0 %v275
        %v376 = vpop.f32.mrf.mxu0
        %v377 = vadd.f32 %v303, %v376
        %v378 = vpop.f32.mrf.mxu0
        %379 = vmatprep.mubr.f32.mxu0 0.0
        %380 = vmatmul.mubr.f32.gmra.mxu0 %v276
        %v381 = vpop.f32.mrf.mxu0
        %v382 = vadd.f32 %v303, %v381
        %v383 = vpop.f32.mrf.mxu0
        %384 = vmatprep.mubr.f32.mxu0 0.0
        %385 = vmatmul.mubr.f32.gmra.mxu0 %v277
        %v386 = vpop.f32.mrf.mxu0
        %v387 = vadd.f32 %v303, %v386
        %v388 = vpop.f32.mrf.mxu0
        %389 = vmatprep.mubr.f32.mxu0 0.0
        %390 = vmatmul.mubr.f32.gmra.mxu0 %v278
        %v391 = vpop.f32.mrf.mxu0
        %v392 = vadd.f32 %v303, %v391
        %v393 = vpop.f32.mrf.mxu0
        %394 = vmatprep.mubr.f32.mxu0 0.0
        %395 = vmatmul.mubr.f32.gmra.mxu0 %v279
        %v396 = vpop.f32.mrf.mxu0
        %v397 = vadd.f32 %v303, %v396
        %v398 = vpop.f32.mrf.mxu0
        %399 = vmatprep.mubr.f32.mxu0 0.0
        %400 = vmatmul.mubr.f32.gmra.mxu0 %v280
        %v401 = vpop.f32.mrf.mxu0
        %v402 = vadd.f32 %v303, %v401
        %v403 = vpop.f32.mrf.mxu0
        %404 = vmatprep.mubr.f32.mxu0 0.0
        %405 = vmatmul.mubr.f32.gmra.mxu0 %v281
        %v406 = vpop.f32.mrf.mxu0
        %v407 = vadd.f32 %v303, %v406
        %v408 = vpop.f32.mrf.mxu0
        %409 = vdwg.mxu0
        %v410 = vmul.f32 %v372, 0.5
        %v411 = vmul.f32 %v377, 0.5
        %v412 = vmul.f32 %v382, 0.5
        %v413 = vmul.f32 %v387, 0.5
        %v414 = vmul.f32 %v392, 0.5
        %v415 = vmul.f32 %v397, 0.5
        %v416 = vmul.f32 %v402, 0.5
        %v417 = vmul.f32 %v407, 0.5
        %v418 = vmul.f32 %v372, 0.70710677
        %v419 = vmul.f32 %v377, 0.70710677
        %v420 = vmul.f32 %v382, 0.70710677
        %v421 = vmul.f32 %v387, 0.70710677
        %v422 = vmul.f32 %v392, 0.70710677
        %v423 = vmul.f32 %v397, 0.70710677
        %v424 = vmul.f32 %v402, 0.70710677
        %v425 = vmul.f32 %v407, 0.70710677
        %v426 = verf.f32.pop %v418
        %v427 = verf.f32.pop %v419
        %v428 = verf.f32.pop %v420
        %v429 = verf.f32.pop %v421
        %v430 = verf.f32.pop %v422
        %v431 = verf.f32.pop %v423
        %v432 = verf.f32.pop %v424
        %v433 = verf.f32.pop %v425
        %v434 = vadd.f32 %v426, 1.0
        %v435 = vadd.f32 %v427, 1.0
        %v436 = vadd.f32 %v428, 1.0
        %v437 = vadd.f32 %v429, 1.0
        %v438 = vadd.f32 %v430, 1.0
        %v439 = vadd.f32 %v431, 1.0
        %v440 = vadd.f32 %v432, 1.0
        %v441 = vadd.f32 %v433, 1.0
        %v442 = vmul.f32 %v410, %v434
        %v443 = vmul.f32 %v411, %v435
        %v444 = vmul.f32 %v412, %v436
        %v445 = vmul.f32 %v413, %v437
        %v446 = vmul.f32 %v414, %v438
        %v447 = vmul.f32 %v415, %v439
        %v448 = vmul.f32 %v416, %v440
        %v449 = vmul.f32 %v417, %v441
        %v450 = vld [vmem:[#allocation7] sm:$0xff]
        %v451 = vld [vmem:[#allocation7 + $0x8] sm:$0xff]
        %v452 = vld [vmem:[#allocation7 + $0x10] sm:$0xff]
        %v453 = vld [vmem:[#allocation7 + $0x18] sm:$0xff]
        %v454 = vld [vmem:[#allocation7 + $0x20] sm:$0xff]
        %v455 = vld [vmem:[#allocation7 + $0x28] sm:$0xff]
        %v456 = vld [vmem:[#allocation7 + $0x30] sm:$0xff]
        %v457 = vld [vmem:[#allocation7 + $0x38] sm:$0xff]
        %v458 = vld [vmem:[#allocation7 + $0x40] sm:$0xff]
        %v459 = vld [vmem:[#allocation7 + $0x48] sm:$0xff]
        %v460 = vld [vmem:[#allocation7 + $0x50] sm:$0xff]
        %v461 = vld [vmem:[#allocation7 + $0x58] sm:$0xff]
        %v462 = vld [vmem:[#allocation7 + $0x60] sm:$0xff]
        %v463 = vld [vmem:[#allocation7 + $0x68] sm:$0xff]
        %v464 = vld [vmem:[#allocation7 + $0x70] sm:$0xff]
        %v465 = vld [vmem:[#allocation7 + $0x78] sm:$0xff]
        %v466 = vld [vmem:[%s4] sm:$0x1]
        %v468 = vlaneseq
        %v469 = vshrl.u32 %v468, 7
        %v470 = vsub.s32 0, %v469
        %v471 = vrot.slane %v466, %v470
        %473 = vmatprep.subr.mxu0 0.0
        %474 = vmatpush1.msra.mxu0 %v465
        %475 = vmatprep.subr.mxu0 0.0
        %476 = vmatpush1.msra.mxu0 %v464
        %477 = vmatprep.subr.mxu0 0.0
        %478 = vmatpush1.msra.mxu0 %v463
        %479 = vmatprep.subr.mxu0 0.0
        %480 = vmatpush1.msra.mxu0 %v462
        %481 = vmatprep.subr.mxu0 0.0
        %482 = vmatpush1.msra.mxu0 %v461
        %483 = vmatprep.subr.mxu0 0.0
        %484 = vmatpush1.msra.mxu0 %v460
        %485 = vmatprep.subr.mxu0 0.0
        %486 = vmatpush1.msra.mxu0 %v459
        %487 = vmatprep.subr.mxu0 0.0
        %488 = vmatpush1.msra.mxu0 %v458
        %489 = vmatprep.subr.mxu0 0.0
        %490 = vmatpush1.msra.mxu0 %v457
        %491 = vmatprep.subr.mxu0 0.0
        %492 = vmatpush1.msra.mxu0 %v456
        %493 = vmatprep.subr.mxu0 0.0
        %494 = vmatpush1.msra.mxu0 %v455
        %495 = vmatprep.subr.mxu0 0.0
        %496 = vmatpush1.msra.mxu0 %v454
        %497 = vmatprep.subr.mxu0 0.0
        %498 = vmatpush1.msra.mxu0 %v453
        %499 = vmatprep.subr.mxu0 0.0
        %500 = vmatpush1.msra.mxu0 %v452
        %501 = vmatprep.subr.mxu0 0.0
        %502 = vmatpush1.msra.mxu0 %v451
        %503 = vmatprep.subr.mxu0 0.0
        %504 = vmatpush1.msra.mxu0 %v450
        %505 = vmatprep.subr.mxu0 0.0
        %506 = vmatpush2.msra.mxu0 0.0
        %507 = vmatprep.subr.mxu0 0.0
        %508 = vmatpush2.msra.mxu0 0.0
        %509 = vmatprep.subr.mxu0 0.0
        %510 = vmatpush2.msra.mxu0 0.0
        %511 = vmatprep.subr.mxu0 0.0
        %512 = vmatpush2.msra.mxu0 0.0
        %513 = vmatprep.subr.mxu0 0.0
        %514 = vmatpush2.msra.mxu0 0.0
        %515 = vmatprep.subr.mxu0 0.0
        %516 = vmatpush2.msra.mxu0 0.0
        %517 = vmatprep.subr.mxu0 0.0
        %518 = vmatpush2.msra.mxu0 0.0
        %519 = vmatprep.subr.mxu0 0.0
        %520 = vmatpush2.msra.mxu0 0.0
        %521 = vmatprep.subr.mxu0 0.0
        %522 = vmatpush2.msra.mxu0 0.0
        %523 = vmatprep.subr.mxu0 0.0
        %524 = vmatpush2.msra.mxu0 0.0
        %525 = vmatprep.subr.mxu0 0.0
        %526 = vmatpush2.msra.mxu0 0.0
        %527 = vmatprep.subr.mxu0 0.0
        %528 = vmatpush2.msra.mxu0 0.0
        %529 = vmatprep.subr.mxu0 0.0
        %530 = vmatpush2.msra.mxu0 0.0
        %531 = vmatprep.subr.mxu0 0.0
        %532 = vmatpush2.msra.mxu0 0.0
        %533 = vmatprep.subr.mxu0 0.0
        %534 = vmatpush2.msra.mxu0 0.0
        %535 = vmatprep.subr.mxu0 0.0
        %536 = vmatpush2.msra.mxu0 0.0
        %537 = vmatprep.mubr.f32.mxu0 0.0
        %538 = vmatmul.mubr.f32.gmra.mxu0 %v442
        %v539 = vpop.f32.mrf.mxu0
        %v540 = vadd.f32 %v471, %v539
        %v541 = vpop.f32.mrf.mxu0
        %542 = vmatprep.mubr.f32.mxu0 0.0
        %543 = vmatmul.mubr.f32.gmra.mxu0 %v443
        %v544 = vpop.f32.mrf.mxu0
        %v545 = vadd.f32 %v471, %v544
        %v546 = vpop.f32.mrf.mxu0
        %547 = vmatprep.mubr.f32.mxu0 0.0
        %548 = vmatmul.mubr.f32.gmra.mxu0 %v444
        %v549 = vpop.f32.mrf.mxu0
        %v550 = vadd.f32 %v471, %v549
        %v551 = vpop.f32.mrf.mxu0
        %552 = vmatprep.mubr.f32.mxu0 0.0
        %553 = vmatmul.mubr.f32.gmra.mxu0 %v445
        %v554 = vpop.f32.mrf.mxu0
        %v555 = vadd.f32 %v471, %v554
        %v556 = vpop.f32.mrf.mxu0
        %557 = vmatprep.mubr.f32.mxu0 0.0
        %558 = vmatmul.mubr.f32.gmra.mxu0 %v446
        %v559 = vpop.f32.mrf.mxu0
        %v560 = vadd.f32 %v471, %v559
        %v561 = vpop.f32.mrf.mxu0
        %562 = vmatprep.mubr.f32.mxu0 0.0
        %563 = vmatmul.mubr.f32.gmra.mxu0 %v447
        %v564 = vpop.f32.mrf.mxu0
        %v565 = vadd.f32 %v471, %v564
        %v566 = vpop.f32.mrf.mxu0
        %567 = vmatprep.mubr.f32.mxu0 0.0
        %568 = vmatmul.mubr.f32.gmra.mxu0 %v448
        %v569 = vpop.f32.mrf.mxu0
        %v570 = vadd.f32 %v471, %v569
        %v571 = vpop.f32.mrf.mxu0
        %572 = vmatprep.mubr.f32.mxu0 0.0
        %573 = vmatmul.mubr.f32.gmra.mxu0 %v449
        %v574 = vpop.f32.mrf.mxu0
        %v575 = vadd.f32 %v471, %v574
        %v576 = vpop.f32.mrf.mxu0
        %577 = vdwg.mxu0
        %578 = vst [vmem:[%s271] sm:$0xff] %v540
        %579 = vst [vmem:[%s271 + $0x8] sm:$0xff] %v545
        %580 = vst [vmem:[%s271 + $0x10] sm:$0xff] %v550
        %581 = vst [vmem:[%s271 + $0x18] sm:$0xff] %v555
        %582 = vst [vmem:[%s271 + $0x20] sm:$0xff] %v560
        %583 = vst [vmem:[%s271 + $0x28] sm:$0xff] %v565
        %584 = vst [vmem:[%s271 + $0x30] sm:$0xff] %v570
        %585 = vst [vmem:[%s271 + $0x38] sm:$0xff] %v575
        %s586 = sand.u32 %s141, 1
        %s587 = scalar_lea.sflag [#allocation4], %s586
        %s588 = sand.u32 %s141, 1
        %s589 = smul.addr %s588, 64
        %s590 = scalar_lea.vmem [#allocation8], %s589
        // Predicated region
        $region53: #{tpu_custom_call.1} parent=39 // pred_check
          %p591 = pneg %p151
        $region54: #{tpu_custom_call.1} parent=39 // pred_check_branch
          %593 = sbr.rel (%p591) target = $region56
        $region55: #{tpu_custom_call.1} parent=39 // pred_region
          %s594 = smul.u32 8, %s23
          %s596 = ssub.s32 1024, 1024
          %597 = vsyncadd %s587, %s596
          %s598 = smul.addr %s594, 128
          %s599 = scalar_lea.hbm %s5, %s598
          %s600 = sshll.u32 %s590, 4
          %s601 = int_to_ptr.vmem [resolvable:$true] %s600
          %606 = dma.vmem_to_hbm [thread:$0]  %s601, 1024, %s599, %s587, 128, 128, 8
        $region56: #{tpu_custom_call.1} parent=39 // pred_fallthru
          _
      $region40: #{tpu_custom_call.1} parent=5 // pred_fallthru
        _
      %p607 = scmp.le.s32.totalorder 2, %s18
      // Predicated region
      $region57: #{tpu_custom_call.1} parent=5 // pred_check
        %p608 = pneg %p607
      $region58: #{tpu_custom_call.1} parent=5 // pred_check_branch
        %610 = sbr.rel (%p608) target = $region60
      $region59: #{tpu_custom_call.1} parent=5 // pred_region
        %s611 = ssub.s32 %s18, 2
        // Predicated region
        $region61: #{tpu_custom_call.1} parent=59 // pred_check
          %p612 = pneg %p157
        $region62: #{tpu_custom_call.1} parent=59 // pred_check_branch
          %614 = sbr.rel (%p612) target = $region64
        $region63: #{tpu_custom_call.1} parent=59 // pred_region
          %s615 = sand.u32 %s142, 1
          %s616 = scalar_lea.sflag [#allocation4], %s615
          %s617 = sand.u32 %s142, 1
          %s618 = smul.addr %s617, 64
          %s619 = scalar_lea.vmem [#allocation8], %s618
          %620 = dma.done %s616, 1024
        $region64: #{tpu_custom_call.1} parent=59 // pred_fallthru
          _
      $region60: #{tpu_custom_call.1} parent=5 // pred_fallthru
        _
    $region6: #{tpu_custom_call.1} parent=1 // loop_footer
      %s22 = sadd.s32 1, %s18
    $region7: #{tpu_custom_call.1} parent=1 // loop_footer_branch
      %17 = sbr.rel target = $region3
    $region8: #{tpu_custom_call.1} parent=1 // loop_exit
      _
    %621 = vsyncpa [#allocation3], 1
    %s622 = scalar_lea.sflag [#allocation3], 1
    %623 = vsyncpa %s622, 1
    %624 = vsyncpa [#allocation6], 1
    %625 = vsyncpa [#allocation4], 1
    %s626 = scalar_lea.sflag [#allocation4], 1
    %627 = vsyncpa %s626, 1

</llo_original>
